<compile_context>
chip_gen: v7x
topology: tpu7x:2x2x1
jax: 0.10.0
libtpu: 0.0.40
codegen_flags: <defaults>
</compile_context>

<pallas_src>
import functools
import math

import numpy as np
import jax
import jax.numpy as jnp
from jax.experimental import pallas as pl
from jax.experimental.pallas import tpu as pltpu


# ----------------------------------------------------------------------------
# Fused Pallas kernel: convs (as dense matmuls) -> dense -> LSTM -> head
# ----------------------------------------------------------------------------
def fused_qnet_kernel(
    ximg_ref, xdata_ref, h0_ref, c0_ref,
    wc1_ref, bc1_ref, wc2_ref, bc2_ref, wc3_ref, bc3_ref,
    w1f_ref, w1d_ref, b1_ref,
    w2_ref, b2_ref,
    wih_ref, whh_ref, bl_ref,
    wo_ref, bo_ref,
    q_ref, hT_ref, cT_ref,
):
    f32 = jnp.float32
    HP = whh_ref.shape[0]            # padded per-gate hidden width (128 lanes)

    # --- conv stack (each conv pre-folded into a dense matrix) ---------------
    x = ximg_ref[...]                                                   # (N, 147)
    a1 = jnp.maximum(
        jnp.dot(x, wc1_ref[...], preferred_element_type=f32) + bc1_ref[...], 0.0)   # (N, 256)
    a2 = jnp.maximum(
        jnp.dot(a1, wc2_ref[...], preferred_element_type=f32) + bc2_ref[...], 0.0)  # (N, 144)
    feat = jnp.maximum(
        jnp.dot(a2, wc3_ref[...], preferred_element_type=f32) + bc3_ref[...], 0.0)  # (N, 32) CHW

    # --- dense1 (x_data concat folded in) + dense2 ---------------------------
    z1 = jnp.maximum(
        jnp.dot(feat, w1f_ref[...], preferred_element_type=f32)
        + xdata_ref[...] * w1d_ref[...] + b1_ref[...], 0.0)             # (N, 128)
    z2 = jnp.maximum(
        jnp.dot(z1, w2_ref[...], preferred_element_type=f32) + b2_ref[...], 0.0)    # (N, 64)

    # --- LSTM: hoisted input projection kept in registers, unrolled recurrence
    T = z2.shape[0]
    gx = jnp.dot(z2, wih_ref[...], preferred_element_type=f32) + bl_ref[...]        # (N, 4*HP)
    whh = whh_ref[...]                                                  # (HP, 4*HP)
    wo = wo_ref[...]                                                    # (HP, OUT_PAD)
    bo = bo_ref[...]                                                    # (1, OUT_PAD)

    h = h0_ref[...]                                                     # (1, HP)
    c = c0_ref[...]                                                     # (1, HP)
    # TODO(synk): W_hh could additionally be pinned in the MXU weight registers
    # across the unrolled recurrence via pltpu.matmul_push_rhs/acc_lhs/pop.
    for t in range(T):                       # fully unrolled, static trip count
        g = gx[t:t + 1, :] + jnp.dot(h, whh, preferred_element_type=f32)   # (1, 4*HP)
        sig = jax.nn.sigmoid(g[:, 0:3 * HP])          # [i | f | o]: one EUP sweep
        g_g = jnp.tanh(g[:, 3 * HP:4 * HP])           # g gate: one EUP sweep
        i_g = sig[:, 0 * HP:1 * HP]                   # vreg-aligned 128-lane slices
        f_g = sig[:, 1 * HP:2 * HP]
        o_g = sig[:, 2 * HP:3 * HP]
        c = f_g * c + i_g * g_g
        h = o_g * jnp.tanh(c)
        # Output head fused into the loop (off the recurrence chain; lane-dense).
        q_ref[t:t + 1, :] = jnp.dot(h, wo, preferred_element_type=f32) + bo

    hT_ref[...] = h
    cT_ref[...] = c


_VMEM = pl.BlockSpec(memory_space=pltpu.MemorySpace.VMEM)


def conv_qnet_forward(prepared, x_img_nhwc, x_data, hidden=None, *, act_dim, h_dim):
    n = x_img_nhwc.shape[0]
    ximg2d = x_img_nhwc.reshape(n, -1).astype(jnp.float32)     # (N, 7*7*3) HWC flatten
    xdata2d = x_data.reshape(n, 1).astype(jnp.float32)         # (N, 1)

    hp = prepared["whh_pad"].shape[0]                          # 128
    out_pad = prepared["wo_pad"].shape[1]                      # 128 (lane-dense)

    if hidden is None:
        h0 = jnp.zeros((1, hp), jnp.float32)
        c0 = jnp.zeros((1, hp), jnp.float32)
    else:
        h_in, c_in = hidden
        h0 = jnp.zeros((1, hp), jnp.float32).at[:, :h_dim].set(
            h_in.reshape(1, h_dim).astype(jnp.float32))
        c0 = jnp.zeros((1, hp), jnp.float32).at[:, :h_dim].set(
            c_in.reshape(1, h_dim).astype(jnp.float32))

    args = (
        ximg2d, xdata2d, h0, c0,
        prepared["wc1"], prepared["bc1"],
        prepared["wc2"], prepared["bc2"],
        prepared["wc3"], prepared["bc3"],
        prepared["w1f"], prepared["w1d"], prepared["b1"],
        prepared["w2t"], prepared["b2"],
        prepared["wih_pad"], prepared["whh_pad"], prepared["bl_pad"],
        prepared["wo_pad"], prepared["bo_pad"],
    )

    # Advisory cost estimate (kernel is latency/DMA-bound; this just helps XLA
    # schedule surrounding ops).
    flops = 0
    for w in (prepared["wc1"], prepared["wc2"], prepared["wc3"],
              prepared["w1f"], prepared["w2t"], prepared["wih_pad"]):
        flops += 2 * n * w.shape[0] * w.shape[1]
    flops += 2 * n * hp * 4 * hp          # recurrence h @ W_hh, T steps
    flops += 2 * n * hp * out_pad         # output head
    transcendentals = n * 5 * hp
    bytes_accessed = sum(int(a.size) * 4 for a in args) + (n * out_pad + 2 * hp) * 4
    cost = pl.CostEstimate(flops=int(flops),
                           transcendentals=int(transcendentals),
                           bytes_accessed=int(bytes_accessed))

    q_pad, h_t, c_t = pl.pallas_call(
        fused_qnet_kernel,
        out_shape=(
            jax.ShapeDtypeStruct((n, out_pad), jnp.float32),
            jax.ShapeDtypeStruct((1, hp), jnp.float32),
            jax.ShapeDtypeStruct((1, hp), jnp.float32),
        ),
        in_specs=[_VMEM] * len(args),
        out_specs=(_VMEM, _VMEM, _VMEM),
        cost_estimate=cost,
    )(*args)

    # Slice the lane-dense padded output back to the logical widths in XLA.
    return q_pad[:, :act_dim], (h_t[:, :h_dim], c_t[:, :h_dim])


# ----------------------------------------------------------------------------
# One-time parameter preparation (transpose / reshape / pad / conv dense-ify)
# ----------------------------------------------------------------------------
def _conv_to_dense(w, b, H, W, chw_out):
    """Fold a stride-1 VALID Conv2d over a fixed HxW input into a dense matmul
    on the HWC-flattened feature vector. Output columns are HWC-ordered, or
    CHW-ordered if chw_out=True (to match PyTorch's NCHW flatten)."""
    w = np.asarray(w, np.float32)              # (OC, IC, KH, KW)
    b = np.asarray(b, np.float32)              # (OC,)
    OC, IC, KH, KW = w.shape
    OH, OW = H - KH + 1, W - KW + 1
    wt = np.transpose(w, (2, 3, 1, 0))         # (KH, KW, IC, OC)
    dense = np.zeros((H * W * IC, OH * OW * OC), np.float32)
    for oy in range(OH):
        for ox in range(OW):
            if chw_out:
                cols = np.arange(OC) * (OH * OW) + (oy * OW + ox)
            else:
                cols = (oy * OW + ox) * OC + np.arange(OC)
            for i in range(KH):
                for j in range(KW):
                    rows = ((oy + i) * W + (ox + j)) * IC + np.arange(IC)
                    dense[np.ix_(rows, cols)] = wt[i, j]
    if chw_out:
        bd = np.repeat(b, OH * OW)
    else:
        bd = np.tile(b, OH * OW)
    return jnp.asarray(dense), jnp.asarray(bd.reshape(1, -1))


def prepare_params(params, hp=128, out_pad=128):
    prep = {}
    prep["wc1"], prep["bc1"] = _conv_to_dense(*params["conv1"], H=7, W=7, chw_out=False)
    prep["wc2"], prep["bc2"] = _conv_to_dense(*params["conv2"], H=4, W=4, chw_out=False)
    prep["wc3"], prep["bc3"] = _conv_to_dense(*params["conv3"], H=3, W=3, chw_out=True)

    w1, b1 = params["dense1"]                  # (128, 33), (128,)
    w1t = np.asarray(w1, np.float32).T         # (33, 128)
    conv_out = prep["wc3"].shape[1]            # 32
    prep["w1f"] = jnp.asarray(w1t[:conv_out, :])
    prep["w1d"] = jnp.asarray(w1t[conv_out:conv_out + 1, :])
    prep["b1"] = jnp.asarray(np.asarray(b1, np.float32).reshape(1, -1))

    w2, b2 = params["dense2"]
    prep["w2t"] = jnp.asarray(np.asarray(w2, np.float32).T)
    prep["b2"] = jnp.asarray(np.asarray(b2, np.float32).reshape(1, -1))

    # LSTM: pad each gate block to `hp` lanes and reorder gates so the sigmoid
    # gates are contiguous:  PyTorch [i, f, g, o]  ->  kernel [i, f, o, g].
    w_ih, w_hh, b_ih, b_hh = params["lstm"]
    w_ih = np.asarray(w_ih, np.float32)        # (4H, 64)
    w_hh = np.asarray(w_hh, np.float32)        # (4H, H)
    bias = np.asarray(b_ih, np.float32) + np.asarray(b_hh, np.float32)   # (4H,)
    H = w_hh.shape[1]
    assert H <= hp
    in_dim = w_ih.shape[1]
    wih_pad = np.zeros((in_dim, 4 * hp), np.float32)
    whh_pad = np.zeros((hp, 4 * hp), np.float32)
    bl_pad = np.zeros((1, 4 * hp), np.float32)
    for new_k, old_k in enumerate((0, 1, 3, 2)):        # i, f, o, g
        rows = slice(old_k * H, (old_k + 1) * H)
        cols = slice(new_k * hp, new_k * hp + H)
        wih_pad[:, cols] = w_ih[rows, :].T
        whh_pad[:H, cols] = w_hh[rows, :].T
        bl_pad[0, cols] = bias[rows]
    prep["wih_pad"] = jnp.asarray(wih_pad)
    prep["whh_pad"] = jnp.asarray(whh_pad)
    prep["bl_pad"] = jnp.asarray(bl_pad)

    # Output head, padded lane-dense (rows >= H and cols >= action_dim are zero).
    wo, bo = params["out"]
    wo = np.asarray(wo, np.float32)            # (A, H)
    bo = np.asarray(bo, np.float32)
    A = wo.shape[0]
    assert A <= out_pad
    wo_pad = np.zeros((hp, out_pad), np.float32)
    wo_pad[:H, :A] = wo.T
    bo_pad = np.zeros((1, out_pad), np.float32)
    bo_pad[0, :A] = bo
    prep["wo_pad"] = jnp.asarray(wo_pad)
    prep["bo_pad"] = jnp.asarray(bo_pad)
    return prep


# ----------------------------------------------------------------------------
# Pure-JAX reference (used to validate the fused kernel)
# ----------------------------------------------------------------------------
def reference_forward(params, x_img_nhwc, x_data, hidden=None):
    hp_prec = jax.lax.Precision.HIGHEST
    x = jnp.transpose(x_img_nhwc, (0, 3, 1, 2)).astype(jnp.float32)   # NCHW
    for name in ("conv1", "conv2", "conv3"):
        w, b = params[name]
        x = jax.lax.conv_general_dilated(
            x, w, window_strides=(1, 1), padding="VALID",
            dimension_numbers=("NCHW", "OIHW", "NCHW"), precision=hp_prec)
        x = jax.nn.relu(x + b.reshape(1, -1, 1, 1))
    n = x.shape[0]
    z = jnp.concatenate([x.reshape(n, -1), x_data.reshape(n, 1)], axis=1)
    w1, b1 = params["dense1"]
    z = jax.nn.relu(jnp.dot(z, w1.T, precision=hp_prec) + b1)
    w2, b2 = params["dense2"]
    z = jax.nn.relu(jnp.dot(z, w2.T, precision=hp_prec) + b2)
    w_ih, w_hh, b_ih, b_hh = params["lstm"]
    H = w_hh.shape[1]
    if hidden is None:
        h = jnp.zeros((1, H), jnp.float32)
        c = jnp.zeros((1, H), jnp.float32)
    else:
        h, c = hidden
        h = h.reshape(1, H).astype(jnp.float32)
        c = c.reshape(1, H).astype(jnp.float32)
    hs = []
    for t in range(n):
        g = (jnp.dot(z[t:t + 1], w_ih.T, precision=hp_prec)
             + jnp.dot(h, w_hh.T, precision=hp_prec) + b_ih + b_hh)
        i_g = jax.nn.sigmoid(g[:, 0 * H:1 * H])
        f_g = jax.nn.sigmoid(g[:, 1 * H:2 * H])
        g_g = jnp.tanh(g[:, 2 * H:3 * H])
        o_g = jax.nn.sigmoid(g[:, 3 * H:4 * H])
        c = f_g * c + i_g * g_g
        h = o_g * jnp.tanh(c)
        hs.append(h)
    hseq = jnp.concatenate(hs, axis=0)
    wo, bo = params["out"]
    return jnp.dot(hseq, wo.T, precision=hp_prec) + bo, (h, c)


# ----------------------------------------------------------------------------
# Deterministic parameter init (PyTorch-style U(-1/sqrt(fan), 1/sqrt(fan)))
# ----------------------------------------------------------------------------
def init_params(key, channel_dim=3, action_dim=7, rnn_hidden_dim=64):
    def uinit(k, shape, fan):
        bound = 1.0 / math.sqrt(fan)
        return jax.random.uniform(k, shape, jnp.float32, -bound, bound)

    ks = jax.random.split(key, 16)
    params = {}
    params["conv1"] = (uinit(ks[0], (16, channel_dim, 4, 4), channel_dim * 16),
                       uinit(ks[1], (16,), channel_dim * 16))
    params["conv2"] = (uinit(ks[2], (16, 16, 2, 2), 16 * 4),
                       uinit(ks[3], (16,), 16 * 4))
    params["conv3"] = (uinit(ks[4], (8, 16, 2, 2), 16 * 4),
                       uinit(ks[5], (8,), 16 * 4))
    conv_out = 8 * 2 * 2
    params["dense1"] = (uinit(ks[6], (128, conv_out + 1), conv_out + 1),
                        uinit(ks[7], (128,), conv_out + 1))
    params["dense2"] = (uinit(ks[8], (64, 128), 128),
                        uinit(ks[9], (64,), 128))
    params["lstm"] = (uinit(ks[10], (4 * rnn_hidden_dim, 64), rnn_hidden_dim),
                      uinit(ks[11], (4 * rnn_hidden_dim, rnn_hidden_dim), rnn_hidden_dim),
                      uinit(ks[12], (4 * rnn_hidden_dim,), rnn_hidden_dim),
                      uinit(ks[13], (4 * rnn_hidden_dim,), rnn_hidden_dim))
    params["out"] = (uinit(ks[14], (action_dim, rnn_hidden_dim), rnn_hidden_dim),
                     uinit(ks[15], (action_dim,), rnn_hidden_dim))
    return params


if __name__ == "__main__":
    key = jax.random.PRNGKey(0)
    k_params, k_img, k_data, k_img2, k_data2 = jax.random.split(key, 5)

    ACT_DIM, H_DIM = 7, 64
    params = init_params(k_params, channel_dim=3, action_dim=ACT_DIM,
                         rnn_hidden_dim=H_DIM)
    prepared = prepare_params(params)

    batch = 4
    x_img = jax.random.uniform(k_img, (batch, 7, 7, 3), jnp.float32)   # NHWC
    x_data = jax.random.uniform(k_data, (batch,), jnp.float32)
    x_img2 = jax.random.uniform(k_img2, (batch, 7, 7, 3), jnp.float32)
    x_data2 = jax.random.uniform(k_data2, (batch,), jnp.float32)

    fwd = jax.jit(functools.partial(conv_qnet_forward, act_dim=ACT_DIM, h_dim=H_DIM))

    # Call 1: zero initial hidden state (matches the PyTorch module's init).
    q1, (h1, c1) = fwd(prepared, x_img, x_data)
    q1 = jax.block_until_ready(q1)
    assert q1.shape == (batch, ACT_DIM)

    q1_ref, hid_ref = reference_forward(params, x_img, x_data)
    q1_ref = jax.block_until_ready(q1_ref)
    assert jnp.allclose(q1, q1_ref, atol=1e-3, rtol=1e-3), (
        f"max abs err {jnp.max(jnp.abs(q1 - q1_ref))}")

    # Call 2: carried hidden state (matches PyTorch's self.hidden_state carry).
    q2, _ = fwd(prepared, x_img2, x_data2, (h1, c1))
    q2 = jax.block_until_ready(q2)
    q2_ref, _ = reference_forward(params, x_img2, x_data2, hid_ref)
    q2_ref = jax.block_until_ready(q2_ref)
    assert jnp.allclose(q2, q2_ref, atol=1e-3, rtol=1e-3), (
        f"max abs err {jnp.max(jnp.abs(q2 - q2_ref))}")

    print("KERNEL_OK")
</pallas_src>

<mosaic_0001>
module attributes {stable_mosaic.version = 11 : i64} {
  func.func @fused_qnet_kernel(%arg0: memref<4x147xf32, #tpu.memory_space<vmem>>, %arg1: memref<4x1xf32, #tpu.memory_space<vmem>>, %arg2: memref<1x128xf32, #tpu.memory_space<vmem>>, %arg3: memref<1x128xf32, #tpu.memory_space<vmem>>, %arg4: memref<147x256xf32, #tpu.memory_space<vmem>>, %arg5: memref<1x256xf32, #tpu.memory_space<vmem>>, %arg6: memref<256x144xf32, #tpu.memory_space<vmem>>, %arg7: memref<1x144xf32, #tpu.memory_space<vmem>>, %arg8: memref<144x32xf32, #tpu.memory_space<vmem>>, %arg9: memref<1x32xf32, #tpu.memory_space<vmem>>, %arg10: memref<32x128xf32, #tpu.memory_space<vmem>>, %arg11: memref<1x128xf32, #tpu.memory_space<vmem>>, %arg12: memref<1x128xf32, #tpu.memory_space<vmem>>, %arg13: memref<128x64xf32, #tpu.memory_space<vmem>>, %arg14: memref<1x64xf32, #tpu.memory_space<vmem>>, %arg15: memref<64x512xf32, #tpu.memory_space<vmem>>, %arg16: memref<128x512xf32, #tpu.memory_space<vmem>>, %arg17: memref<1x512xf32, #tpu.memory_space<vmem>>, %arg18: memref<128x128xf32, #tpu.memory_space<vmem>>, %arg19: memref<1x128xf32, #tpu.memory_space<vmem>>, %arg20: memref<4x128xf32, #tpu.memory_space<vmem>>, %arg21: memref<1x128xf32, #tpu.memory_space<vmem>>, %arg22: memref<1x128xf32, #tpu.memory_space<vmem>>) attributes {dimension_semantics = [], scalar_prefetch = 0 : i64, scratch_operands = 0 : i64, tpu.core_type = #tpu.core_type<tc>} {
    %c0 = arith.constant 0 : index
    %c0_0 = arith.constant 0 : index
    %0 = vector.load %arg0[%c0, %c0_0] : memref<4x147xf32, #tpu.memory_space<vmem>>, vector<4x147xf32>
    %c0_1 = arith.constant 0 : index
    %c0_2 = arith.constant 0 : index
    %1 = vector.load %arg4[%c0_1, %c0_2] : memref<147x256xf32, #tpu.memory_space<vmem>>, vector<147x256xf32>
    %cst = arith.constant dense<0.000000e+00> : vector<4x256xf32>
    %2 = tpu.matmul %0, %1, %cst {dimension_numbers = #tpu.dot_dimension_numbers<[1], [0], [0], [1], [0, 0, 1, 1], [], []>} : vector<4x147xf32>, vector<147x256xf32>, vector<4x256xf32> -> vector<4x256xf32>
    %c0_3 = arith.constant 0 : index
    %c0_4 = arith.constant 0 : index
    %3 = vector.load %arg5[%c0_3, %c0_4] : memref<1x256xf32, #tpu.memory_space<vmem>>, vector<1x256xf32>
    %4 = vector.broadcast %3 : vector<1x256xf32> to vector<4x256xf32>
    %5 = arith.addf %2, %4 : vector<4x256xf32>
    %cst_5 = arith.constant 0.000000e+00 : f32
    %6 = vector.broadcast %cst_5 : f32 to vector<4x256xf32>
    %7 = arith.maximumf %5, %6 : vector<4x256xf32>
    %c0_6 = arith.constant 0 : index
    %c0_7 = arith.constant 0 : index
    %8 = vector.load %arg6[%c0_6, %c0_7] : memref<256x144xf32, #tpu.memory_space<vmem>>, vector<256x144xf32>
    %cst_8 = arith.constant dense<0.000000e+00> : vector<4x144xf32>
    %9 = tpu.matmul %7, %8, %cst_8 {dimension_numbers = #tpu.dot_dimension_numbers<[1], [0], [0], [1], [0, 0, 1, 1], [], []>} : vector<4x256xf32>, vector<256x144xf32>, vector<4x144xf32> -> vector<4x144xf32>
    %c0_9 = arith.constant 0 : index
    %c0_10 = arith.constant 0 : index
    %10 = vector.load %arg7[%c0_9, %c0_10] : memref<1x144xf32, #tpu.memory_space<vmem>>, vector<1x144xf32>
    %11 = vector.broadcast %10 : vector<1x144xf32> to vector<4x144xf32>
    %12 = arith.addf %9, %11 : vector<4x144xf32>
    %cst_11 = arith.constant 0.000000e+00 : f32
    %13 = vector.broadcast %cst_11 : f32 to vector<4x144xf32>
    %14 = arith.maximumf %12, %13 : vector<4x144xf32>
    %c0_12 = arith.constant 0 : index
    %c0_13 = arith.constant 0 : index
    %15 = vector.load %arg8[%c0_12, %c0_13] : memref<144x32xf32, #tpu.memory_space<vmem>>, vector<144x32xf32>
    %cst_14 = arith.constant dense<0.000000e+00> : vector<4x32xf32>
    %16 = tpu.matmul %14, %15, %cst_14 {dimension_numbers = #tpu.dot_dimension_numbers<[1], [0], [0], [1], [0, 0, 1, 1], [], []>} : vector<4x144xf32>, vector<144x32xf32>, vector<4x32xf32> -> vector<4x32xf32>
    %c0_15 = arith.constant 0 : index
    %c0_16 = arith.constant 0 : index
    %17 = vector.load %arg9[%c0_15, %c0_16] : memref<1x32xf32, #tpu.memory_space<vmem>>, vector<1x32xf32>
    %18 = vector.broadcast %17 : vector<1x32xf32> to vector<4x32xf32>
    %19 = arith.addf %16, %18 : vector<4x32xf32>
    %cst_17 = arith.constant 0.000000e+00 : f32
    %20 = vector.broadcast %cst_17 : f32 to vector<4x32xf32>
    %21 = arith.maximumf %19, %20 : vector<4x32xf32>
    %c0_18 = arith.constant 0 : index
    %c0_19 = arith.constant 0 : index
    %22 = vector.load %arg10[%c0_18, %c0_19] : memref<32x128xf32, #tpu.memory_space<vmem>>, vector<32x128xf32>
    %cst_20 = arith.constant dense<0.000000e+00> : vector<4x128xf32>
    %23 = tpu.matmul %21, %22, %cst_20 {dimension_numbers = #tpu.dot_dimension_numbers<[1], [0], [0], [1], [0, 0, 1, 1], [], []>} : vector<4x32xf32>, vector<32x128xf32>, vector<4x128xf32> -> vector<4x128xf32>
    %c0_21 = arith.constant 0 : index
    %c0_22 = arith.constant 0 : index
    %24 = vector.load %arg1[%c0_21, %c0_22] : memref<4x1xf32, #tpu.memory_space<vmem>>, vector<4x1xf32>
    %c0_23 = arith.constant 0 : index
    %c0_24 = arith.constant 0 : index
    %25 = vector.load %arg11[%c0_23, %c0_24] : memref<1x128xf32, #tpu.memory_space<vmem>>, vector<1x128xf32>
    %26 = vector.broadcast %24 : vector<4x1xf32> to vector<4x128xf32>
    %27 = vector.broadcast %25 : vector<1x128xf32> to vector<4x128xf32>
    %28 = arith.mulf %26, %27 : vector<4x128xf32>
    %29 = arith.addf %23, %28 : vector<4x128xf32>
    %c0_25 = arith.constant 0 : index
    %c0_26 = arith.constant 0 : index
    %30 = vector.load %arg12[%c0_25, %c0_26] : memref<1x128xf32, #tpu.memory_space<vmem>>, vector<1x128xf32>
    %31 = vector.broadcast %30 : vector<1x128xf32> to vector<4x128xf32>
    %32 = arith.addf %29, %31 : vector<4x128xf32>
    %cst_27 = arith.constant 0.000000e+00 : f32
    %33 = vector.broadcast %cst_27 : f32 to vector<4x128xf32>
    %34 = arith.maximumf %32, %33 : vector<4x128xf32>
    %c0_28 = arith.constant 0 : index
    %c0_29 = arith.constant 0 : index
    %35 = vector.load %arg13[%c0_28, %c0_29] : memref<128x64xf32, #tpu.memory_space<vmem>>, vector<128x64xf32>
    %cst_30 = arith.constant dense<0.000000e+00> : vector<4x64xf32>
    %36 = tpu.matmul %34, %35, %cst_30 {dimension_numbers = #tpu.dot_dimension_numbers<[1], [0], [0], [1], [0, 0, 1, 1], [], []>} : vector<4x128xf32>, vector<128x64xf32>, vector<4x64xf32> -> vector<4x64xf32>
    %c0_31 = arith.constant 0 : index
    %c0_32 = arith.constant 0 : index
    %37 = vector.load %arg14[%c0_31, %c0_32] : memref<1x64xf32, #tpu.memory_space<vmem>>, vector<1x64xf32>
    %38 = vector.broadcast %37 : vector<1x64xf32> to vector<4x64xf32>
    %39 = arith.addf %36, %38 : vector<4x64xf32>
    %cst_33 = arith.constant 0.000000e+00 : f32
    %40 = vector.broadcast %cst_33 : f32 to vector<4x64xf32>
    %41 = arith.maximumf %39, %40 : vector<4x64xf32>
    %c0_34 = arith.constant 0 : index
    %c0_35 = arith.constant 0 : index
    %42 = vector.load %arg15[%c0_34, %c0_35] : memref<64x512xf32, #tpu.memory_space<vmem>>, vector<64x512xf32>
    %cst_36 = arith.constant dense<0.000000e+00> : vector<4x512xf32>
    %43 = tpu.matmul %41, %42, %cst_36 {dimension_numbers = #tpu.dot_dimension_numbers<[1], [0], [0], [1], [0, 0, 1, 1], [], []>} : vector<4x64xf32>, vector<64x512xf32>, vector<4x512xf32> -> vector<4x512xf32>
    %c0_37 = arith.constant 0 : index
    %c0_38 = arith.constant 0 : index
    %44 = vector.load %arg17[%c0_37, %c0_38] : memref<1x512xf32, #tpu.memory_space<vmem>>, vector<1x512xf32>
    %45 = vector.broadcast %44 : vector<1x512xf32> to vector<4x512xf32>
    %46 = arith.addf %43, %45 : vector<4x512xf32>
    %c0_39 = arith.constant 0 : index
    %c0_40 = arith.constant 0 : index
    %47 = vector.load %arg16[%c0_39, %c0_40] : memref<128x512xf32, #tpu.memory_space<vmem>>, vector<128x512xf32>
    %c0_41 = arith.constant 0 : index
    %c0_42 = arith.constant 0 : index
    %48 = vector.load %arg18[%c0_41, %c0_42] : memref<128x128xf32, #tpu.memory_space<vmem>>, vector<128x128xf32>
    %c0_43 = arith.constant 0 : index
    %c0_44 = arith.constant 0 : index
    %49 = vector.load %arg19[%c0_43, %c0_44] : memref<1x128xf32, #tpu.memory_space<vmem>>, vector<1x128xf32>
    %c0_45 = arith.constant 0 : index
    %c0_46 = arith.constant 0 : index
    %50 = vector.load %arg2[%c0_45, %c0_46] : memref<1x128xf32, #tpu.memory_space<vmem>>, vector<1x128xf32>
    %c0_47 = arith.constant 0 : index
    %c0_48 = arith.constant 0 : index
    %51 = vector.load %arg3[%c0_47, %c0_48] : memref<1x128xf32, #tpu.memory_space<vmem>>, vector<1x128xf32>
    %52 = vector.extract_strided_slice %46 {offsets = [0, 0], sizes = [1, 512], strides = [1, 1]} : vector<4x512xf32> to vector<1x512xf32>
    %cst_49 = arith.constant dense<0.000000e+00> : vector<1x512xf32>
    %53 = tpu.matmul %50, %47, %cst_49 {dimension_numbers = #tpu.dot_dimension_numbers<[1], [0], [0], [1], [0, 0, 1, 1], [], []>} : vector<1x128xf32>, vector<128x512xf32>, vector<1x512xf32> -> vector<1x512xf32>
    %54 = arith.addf %52, %53 : vector<1x512xf32>
    %55 = vector.extract_strided_slice %54 {offsets = [0, 0], sizes = [1, 384], strides = [1, 1]} : vector<1x512xf32> to vector<1x384xf32>
    %56 = arith.negf %55 : vector<1x384xf32>
    %57 = math.exp %56 : vector<1x384xf32>
    %cst_50 = arith.constant 1.000000e+00 : f32
    %58 = vector.broadcast %cst_50 : f32 to vector<1x384xf32>
    %59 = arith.addf %58, %57 : vector<1x384xf32>
    %60 = arith.divf %58, %59 : vector<1x384xf32>
    %61 = vector.extract_strided_slice %54 {offsets = [0, 384], sizes = [1, 128], strides = [1, 1]} : vector<1x512xf32> to vector<1x128xf32>
    %62 = math.tanh %61 : vector<1x128xf32>
    %63 = vector.extract_strided_slice %60 {offsets = [0, 0], sizes = [1, 128], strides = [1, 1]} : vector<1x384xf32> to vector<1x128xf32>
    %64 = vector.extract_strided_slice %60 {offsets = [0, 128], sizes = [1, 128], strides = [1, 1]} : vector<1x384xf32> to vector<1x128xf32>
    %65 = vector.extract_strided_slice %60 {offsets = [0, 256], sizes = [1, 128], strides = [1, 1]} : vector<1x384xf32> to vector<1x128xf32>
    %66 = arith.mulf %64, %51 : vector<1x128xf32>
    %67 = arith.mulf %63, %62 : vector<1x128xf32>
    %68 = arith.addf %66, %67 : vector<1x128xf32>
    %69 = math.tanh %68 : vector<1x128xf32>
    %70 = arith.mulf %65, %69 : vector<1x128xf32>
    %cst_51 = arith.constant dense<0.000000e+00> : vector<1x128xf32>
    %71 = tpu.matmul %70, %48, %cst_51 {dimension_numbers = #tpu.dot_dimension_numbers<[1], [0], [0], [1], [0, 0, 1, 1], [], []>} : vector<1x128xf32>, vector<128x128xf32>, vector<1x128xf32> -> vector<1x128xf32>
    %72 = arith.addf %71, %49 : vector<1x128xf32>
    %c0_52 = arith.constant 0 : index
    %c0_53 = arith.constant 0 : index
    %73 = vector.load %arg20[%c0_52, %c0_53] : memref<4x128xf32, #tpu.memory_space<vmem>>, vector<1x128xf32>
    tpu.vector_store %arg20[%c0_52, %c0_53], %72 {strides = array<i32>} : memref<4x128xf32, #tpu.memory_space<vmem>>, vector<1x128xf32>,
    %74 = vector.extract_strided_slice %46 {offsets = [1, 0], sizes = [1, 512], strides = [1, 1]} : vector<4x512xf32> to vector<1x512xf32>
    %cst_54 = arith.constant dense<0.000000e+00> : vector<1x512xf32>
    %75 = tpu.matmul %70, %47, %cst_54 {dimension_numbers = #tpu.dot_dimension_numbers<[1], [0], [0], [1], [0, 0, 1, 1], [], []>} : vector<1x128xf32>, vector<128x512xf32>, vector<1x512xf32> -> vector<1x512xf32>
    %76 = arith.addf %74, %75 : vector<1x512xf32>
    %77 = vector.extract_strided_slice %76 {offsets = [0, 0], sizes = [1, 384], strides = [1, 1]} : vector<1x512xf32> to vector<1x384xf32>
    %78 = arith.negf %77 : vector<1x384xf32>
    %79 = math.exp %78 : vector<1x384xf32>
    %cst_55 = arith.constant 1.000000e+00 : f32
    %80 = vector.broadcast %cst_55 : f32 to vector<1x384xf32>
    %81 = arith.addf %80, %79 : vector<1x384xf32>
    %82 = arith.divf %80, %81 : vector<1x384xf32>
    %83 = vector.extract_strided_slice %76 {offsets = [0, 384], sizes = [1, 128], strides = [1, 1]} : vector<1x512xf32> to vector<1x128xf32>
    %84 = math.tanh %83 : vector<1x128xf32>
    %85 = vector.extract_strided_slice %82 {offsets = [0, 0], sizes = [1, 128], strides = [1, 1]} : vector<1x384xf32> to vector<1x128xf32>
    %86 = vector.extract_strided_slice %82 {offsets = [0, 128], sizes = [1, 128], strides = [1, 1]} : vector<1x384xf32> to vector<1x128xf32>
    %87 = vector.extract_strided_slice %82 {offsets = [0, 256], sizes = [1, 128], strides = [1, 1]} : vector<1x384xf32> to vector<1x128xf32>
    %88 = arith.mulf %86, %68 : vector<1x128xf32>
    %89 = arith.mulf %85, %84 : vector<1x128xf32>
    %90 = arith.addf %88, %89 : vector<1x128xf32>
    %91 = math.tanh %90 : vector<1x128xf32>
    %92 = arith.mulf %87, %91 : vector<1x128xf32>
    %cst_56 = arith.constant dense<0.000000e+00> : vector<1x128xf32>
    %93 = tpu.matmul %92, %48, %cst_56 {dimension_numbers = #tpu.dot_dimension_numbers<[1], [0], [0], [1], [0, 0, 1, 1], [], []>} : vector<1x128xf32>, vector<128x128xf32>, vector<1x128xf32> -> vector<1x128xf32>
    %94 = arith.addf %93, %49 : vector<1x128xf32>
    %c1 = arith.constant 1 : index
    %c0_57 = arith.constant 0 : index
    %95 = vector.load %arg20[%c1, %c0_57] : memref<4x128xf32, #tpu.memory_space<vmem>>, vector<1x128xf32>
    tpu.vector_store %arg20[%c1, %c0_57], %94 {strides = array<i32>} : memref<4x128xf32, #tpu.memory_space<vmem>>, vector<1x128xf32>,
    %96 = vector.extract_strided_slice %46 {offsets = [2, 0], sizes = [1, 512], strides = [1, 1]} : vector<4x512xf32> to vector<1x512xf32>
    %cst_58 = arith.constant dense<0.000000e+00> : vector<1x512xf32>
    %97 = tpu.matmul %92, %47, %cst_58 {dimension_numbers = #tpu.dot_dimension_numbers<[1], [0], [0], [1], [0, 0, 1, 1], [], []>} : vector<1x128xf32>, vector<128x512xf32>, vector<1x512xf32> -> vector<1x512xf32>
    %98 = arith.addf %96, %97 : vector<1x512xf32>
    %99 = vector.extract_strided_slice %98 {offsets = [0, 0], sizes = [1, 384], strides = [1, 1]} : vector<1x512xf32> to vector<1x384xf32>
    %100 = arith.negf %99 : vector<1x384xf32>
    %101 = math.exp %100 : vector<1x384xf32>
    %cst_59 = arith.constant 1.000000e+00 : f32
    %102 = vector.broadcast %cst_59 : f32 to vector<1x384xf32>
    %103 = arith.addf %102, %101 : vector<1x384xf32>
    %104 = arith.divf %102, %103 : vector<1x384xf32>
    %105 = vector.extract_strided_slice %98 {offsets = [0, 384], sizes = [1, 128], strides = [1, 1]} : vector<1x512xf32> to vector<1x128xf32>
    %106 = math.tanh %105 : vector<1x128xf32>
    %107 = vector.extract_strided_slice %104 {offsets = [0, 0], sizes = [1, 128], strides = [1, 1]} : vector<1x384xf32> to vector<1x128xf32>
    %108 = vector.extract_strided_slice %104 {offsets = [0, 128], sizes = [1, 128], strides = [1, 1]} : vector<1x384xf32> to vector<1x128xf32>
    %109 = vector.extract_strided_slice %104 {offsets = [0, 256], sizes = [1, 128], strides = [1, 1]} : vector<1x384xf32> to vector<1x128xf32>
    %110 = arith.mulf %108, %90 : vector<1x128xf32>
    %111 = arith.mulf %107, %106 : vector<1x128xf32>
    %112 = arith.addf %110, %111 : vector<1x128xf32>
    %113 = math.tanh %112 : vector<1x128xf32>
    %114 = arith.mulf %109, %113 : vector<1x128xf32>
    %cst_60 = arith.constant dense<0.000000e+00> : vector<1x128xf32>
    %115 = tpu.matmul %114, %48, %cst_60 {dimension_numbers = #tpu.dot_dimension_numbers<[1], [0], [0], [1], [0, 0, 1, 1], [], []>} : vector<1x128xf32>, vector<128x128xf32>, vector<1x128xf32> -> vector<1x128xf32>
    %116 = arith.addf %115, %49 : vector<1x128xf32>
    %c2 = arith.constant 2 : index
    %c0_61 = arith.constant 0 : index
    %117 = vector.load %arg20[%c2, %c0_61] : memref<4x128xf32, #tpu.memory_space<vmem>>, vector<1x128xf32>
    tpu.vector_store %arg20[%c2, %c0_61], %116 {strides = array<i32>} : memref<4x128xf32, #tpu.memory_space<vmem>>, vector<1x128xf32>,
    %118 = vector.extract_strided_slice %46 {offsets = [3, 0], sizes = [1, 512], strides = [1, 1]} : vector<4x512xf32> to vector<1x512xf32>
    %cst_62 = arith.constant dense<0.000000e+00> : vector<1x512xf32>
    %119 = tpu.matmul %114, %47, %cst_62 {dimension_numbers = #tpu.dot_dimension_numbers<[1], [0], [0], [1], [0, 0, 1, 1], [], []>} : vector<1x128xf32>, vector<128x512xf32>, vector<1x512xf32> -> vector<1x512xf32>
    %120 = arith.addf %118, %119 : vector<1x512xf32>
    %121 = vector.extract_strided_slice %120 {offsets = [0, 0], sizes = [1, 384], strides = [1, 1]} : vector<1x512xf32> to vector<1x384xf32>
    %122 = arith.negf %121 : vector<1x384xf32>
    %123 = math.exp %122 : vector<1x384xf32>
    %cst_63 = arith.constant 1.000000e+00 : f32
    %124 = vector.broadcast %cst_63 : f32 to vector<1x384xf32>
    %125 = arith.addf %124, %123 : vector<1x384xf32>
    %126 = arith.divf %124, %125 : vector<1x384xf32>
    %127 = vector.extract_strided_slice %120 {offsets = [0, 384], sizes = [1, 128], strides = [1, 1]} : vector<1x512xf32> to vector<1x128xf32>
    %128 = math.tanh %127 : vector<1x128xf32>
    %129 = vector.extract_strided_slice %126 {offsets = [0, 0], sizes = [1, 128], strides = [1, 1]} : vector<1x384xf32> to vector<1x128xf32>
    %130 = vector.extract_strided_slice %126 {offsets = [0, 128], sizes = [1, 128], strides = [1, 1]} : vector<1x384xf32> to vector<1x128xf32>
    %131 = vector.extract_strided_slice %126 {offsets = [0, 256], sizes = [1, 128], strides = [1, 1]} : vector<1x384xf32> to vector<1x128xf32>
    %132 = arith.mulf %130, %112 : vector<1x128xf32>
    %133 = arith.mulf %129, %128 : vector<1x128xf32>
    %134 = arith.addf %132, %133 : vector<1x128xf32>
    %135 = math.tanh %134 : vector<1x128xf32>
    %136 = arith.mulf %131, %135 : vector<1x128xf32>
    %cst_64 = arith.constant dense<0.000000e+00> : vector<1x128xf32>
    %137 = tpu.matmul %136, %48, %cst_64 {dimension_numbers = #tpu.dot_dimension_numbers<[1], [0], [0], [1], [0, 0, 1, 1], [], []>} : vector<1x128xf32>, vector<128x128xf32>, vector<1x128xf32> -> vector<1x128xf32>
    %138 = arith.addf %137, %49 : vector<1x128xf32>
    %c3 = arith.constant 3 : index
    %c0_65 = arith.constant 0 : index
    %139 = vector.load %arg20[%c3, %c0_65] : memref<4x128xf32, #tpu.memory_space<vmem>>, vector<1x128xf32>
    tpu.vector_store %arg20[%c3, %c0_65], %138 {strides = array<i32>} : memref<4x128xf32, #tpu.memory_space<vmem>>, vector<1x128xf32>,
    %c0_66 = arith.constant 0 : index
    %c0_67 = arith.constant 0 : index
    %140 = vector.load %arg21[%c0_66, %c0_67] : memref<1x128xf32, #tpu.memory_space<vmem>>, vector<1x128xf32>
    tpu.vector_store %arg21[%c0_66, %c0_67], %136 {strides = array<i32>} : memref<1x128xf32, #tpu.memory_space<vmem>>, vector<1x128xf32>,
    %c0_68 = arith.constant 0 : index
    %c0_69 = arith.constant 0 : index
    %141 = vector.load %arg22[%c0_68, %c0_69] : memref<1x128xf32, #tpu.memory_space<vmem>>, vector<1x128xf32>
    tpu.vector_store %arg22[%c0_68, %c0_69], %134 {strides = array<i32>} : memref<1x128xf32, #tpu.memory_space<vmem>>, vector<1x128xf32>,
    return
  }
}

</mosaic_0001>

<llo_original>
// kernel: conv_qnet_forward.1
$region0: #{conv_qnet_forward.1}
  #allocation0 [shape = 'u32[]', space=smem, size = 0x4, offset = 0x4, fixed_abs, tag = 'smem constant byte address 0x4 - core index']
  #allocation1 [shape = 'u32[144,128]{1,0:T(1,128)}', space=vmem, size = 0x12000, scoped, tag = 'internal scratch']
  %s0 = inlined_call_operand.vmem [shape: f32[4,147], index: 0, kind: input, shape index: {}]
  %s1 = inlined_call_operand.vmem [shape: f32[4,1], index: 1, kind: input, shape index: {}]
  %s2 = inlined_call_operand.vmem [shape: f32[1,128], index: 2, kind: input, shape index: {}, may-alias: {2,3}]
  %s3 = inlined_call_operand.vmem [shape: f32[1,128], index: 3, kind: input, shape index: {}, may-alias: {2,3}]
  %s4 = inlined_call_operand.vmem [shape: f32[147,256], index: 4, kind: input, shape index: {}]
  %s5 = inlined_call_operand.vmem [shape: f32[1,256], index: 5, kind: input, shape index: {}]
  %s6 = inlined_call_operand.vmem [shape: f32[256,144], index: 6, kind: input, shape index: {}]
  %s7 = inlined_call_operand.vmem [shape: f32[1,144], index: 7, kind: input, shape index: {}]
  %s8 = inlined_call_operand.vmem [shape: f32[144,32], index: 8, kind: input, shape index: {}]
  %s9 = inlined_call_operand.vmem [shape: f32[1,32], index: 9, kind: input, shape index: {}]
  %s10 = inlined_call_operand.vmem [shape: f32[32,128], index: 10, kind: input, shape index: {}]
  %s11 = inlined_call_operand.vmem [shape: f32[1,128], index: 11, kind: input, shape index: {}]
  %s12 = inlined_call_operand.vmem [shape: f32[1,128], index: 12, kind: input, shape index: {}]
  %s13 = inlined_call_operand.vmem [shape: f32[128,64], index: 13, kind: input, shape index: {}]
  %s14 = inlined_call_operand.vmem [shape: f32[1,64], index: 14, kind: input, shape index: {}]
  %s15 = inlined_call_operand.vmem [shape: f32[64,512], index: 15, kind: input, shape index: {}]
  %s16 = inlined_call_operand.vmem [shape: f32[128,512], index: 16, kind: input, shape index: {}]
  %s17 = inlined_call_operand.vmem [shape: f32[1,512], index: 17, kind: input, shape index: {}]
  %s18 = inlined_call_operand.vmem [shape: f32[128,128], index: 18, kind: input, shape index: {}]
  %s19 = inlined_call_operand.vmem [shape: f32[1,128], index: 19, kind: input, shape index: {}]
  %s20 = inlined_call_operand.hbm [shape: f32[4,128], index: 20, kind: output, shape index: {0}]
  %s21 = inlined_call_operand.hbm [shape: f32[1,128], index: 21, kind: output, shape index: {1}]
  %s22 = inlined_call_operand.hbm [shape: f32[1,128], index: 22, kind: output, shape index: {2}]
  %23 = xla_tuple %s20, %s21, %s22
  %s24 = sld [smem:[#allocation0]]
  $region106: #{conv_qnet_forward.1} parent=0
    _
  %s26 = ssub.s32 1, %s24
  %s27 = scalar_select 0, %s26, %s24
  $region1: #{conv_qnet_forward.1} parent=0
    #allocation2 [shape = 'u8[2048]{0}', space=vmem, size = 0x800, scoped, tag = 'output window, operand 0, single buffered']
    #allocation3 [shape = 's32[1]{0}', space=sflag, size = 0x4, scoped, tag = 'scoped memory for conv_qnet_forward.1']
    #allocation4 [shape = 'u8[512]{0}', space=vmem, size = 0x400, scoped, tag = 'output window, operand 1, single buffered']
    #allocation5 [shape = 's32[1]{0}', space=sflag, size = 0x4, scoped, tag = 'scoped memory for conv_qnet_forward.1']
    #allocation6 [shape = 'u8[512]{0}', space=vmem, size = 0x400, scoped, tag = 'output window, operand 2, single buffered']
    %28 = vsyncpa [#allocation3], 0
    %29 = vsyncpa [#allocation5], 0
    // Predicated region
    $region2: #{conv_qnet_forward.1} parent=1 // pred_check
      _
    $region3: #{conv_qnet_forward.1} parent=1 // pred_check_branch
      %31 = sbr.rel (0) target = $region5
    $region4: #{conv_qnet_forward.1} parent=1 // pred_region
      _
    $region5: #{conv_qnet_forward.1} parent=1 // pred_fallthru
      _
    // Predicated region
    $region6: #{conv_qnet_forward.1} parent=1 // pred_check
      _
    $region7: #{conv_qnet_forward.1} parent=1 // pred_check_branch
      %33 = sbr.rel (0) target = $region9
    $region8: #{conv_qnet_forward.1} parent=1 // pred_region
      _
    $region9: #{conv_qnet_forward.1} parent=1 // pred_fallthru
      _
    // Predicated region
    $region10: #{conv_qnet_forward.1} parent=1 // pred_check
      _
    $region11: #{conv_qnet_forward.1} parent=1 // pred_check_branch
      %35 = sbr.rel (0) target = $region13
    $region12: #{conv_qnet_forward.1} parent=1 // pred_region
      _
    $region13: #{conv_qnet_forward.1} parent=1 // pred_fallthru
      _
    // Predicated region
    $region14: #{conv_qnet_forward.1} parent=1 // pred_check
      _
    $region15: #{conv_qnet_forward.1} parent=1 // pred_check_branch
      %37 = sbr.rel (0) target = $region17
    $region16: #{conv_qnet_forward.1} parent=1 // pred_region
      _
    $region17: #{conv_qnet_forward.1} parent=1 // pred_fallthru
      _
    // Predicated region
    $region18: #{conv_qnet_forward.1} parent=1 // pred_check
      _
    $region19: #{conv_qnet_forward.1} parent=1 // pred_check_branch
      %39 = sbr.rel (0) target = $region21
    $region20: #{conv_qnet_forward.1} parent=1 // pred_region
      _
    $region21: #{conv_qnet_forward.1} parent=1 // pred_fallthru
      _
    // Predicated region
    $region22: #{conv_qnet_forward.1} parent=1 // pred_check
      _
    $region23: #{conv_qnet_forward.1} parent=1 // pred_check_branch
      %41 = sbr.rel (0) target = $region25
    $region24: #{conv_qnet_forward.1} parent=1 // pred_region
      _
    $region25: #{conv_qnet_forward.1} parent=1 // pred_fallthru
      _
    // Predicated region
    $region26: #{conv_qnet_forward.1} parent=1 // pred_check
      _
    $region27: #{conv_qnet_forward.1} parent=1 // pred_check_branch
      %43 = sbr.rel (0) target = $region29
    $region28: #{conv_qnet_forward.1} parent=1 // pred_region
      _
    $region29: #{conv_qnet_forward.1} parent=1 // pred_fallthru
      _
    // Predicated region
    $region30: #{conv_qnet_forward.1} parent=1 // pred_check
      _
    $region31: #{conv_qnet_forward.1} parent=1 // pred_check_branch
      %45 = sbr.rel (0) target = $region33
    $region32: #{conv_qnet_forward.1} parent=1 // pred_region
      _
    $region33: #{conv_qnet_forward.1} parent=1 // pred_fallthru
      _
    // Predicated region
    $region34: #{conv_qnet_forward.1} parent=1 // pred_check
      _
    $region35: #{conv_qnet_forward.1} parent=1 // pred_check_branch
      %47 = sbr.rel (0) target = $region37
    $region36: #{conv_qnet_forward.1} parent=1 // pred_region
      _
    $region37: #{conv_qnet_forward.1} parent=1 // pred_fallthru
      _
    // Predicated region
    $region38: #{conv_qnet_forward.1} parent=1 // pred_check
      _
    $region39: #{conv_qnet_forward.1} parent=1 // pred_check_branch
      %49 = sbr.rel (0) target = $region41
    $region40: #{conv_qnet_forward.1} parent=1 // pred_region
      _
    $region41: #{conv_qnet_forward.1} parent=1 // pred_fallthru
      _
    // Predicated region
    $region42: #{conv_qnet_forward.1} parent=1 // pred_check
      _
    $region43: #{conv_qnet_forward.1} parent=1 // pred_check_branch
      %51 = sbr.rel (0) target = $region45
    $region44: #{conv_qnet_forward.1} parent=1 // pred_region
      _
    $region45: #{conv_qnet_forward.1} parent=1 // pred_fallthru
      _
    // Predicated region
    $region46: #{conv_qnet_forward.1} parent=1 // pred_check
      _
    $region47: #{conv_qnet_forward.1} parent=1 // pred_check_branch
      %53 = sbr.rel (0) target = $region49
    $region48: #{conv_qnet_forward.1} parent=1 // pred_region
      _
    $region49: #{conv_qnet_forward.1} parent=1 // pred_fallthru
      _
    // Predicated region
    $region50: #{conv_qnet_forward.1} parent=1 // pred_check
      _
    $region51: #{conv_qnet_forward.1} parent=1 // pred_check_branch
      %55 = sbr.rel (0) target = $region53
    $region52: #{conv_qnet_forward.1} parent=1 // pred_region
      _
    $region53: #{conv_qnet_forward.1} parent=1 // pred_fallthru
      _
    // Predicated region
    $region54: #{conv_qnet_forward.1} parent=1 // pred_check
      _
    $region55: #{conv_qnet_forward.1} parent=1 // pred_check_branch
      %57 = sbr.rel (0) target = $region57
    $region56: #{conv_qnet_forward.1} parent=1 // pred_region
      _
    $region57: #{conv_qnet_forward.1} parent=1 // pred_fallthru
      _
    // Predicated region
    $region58: #{conv_qnet_forward.1} parent=1 // pred_check
      _
    $region59: #{conv_qnet_forward.1} parent=1 // pred_check_branch
      %59 = sbr.rel (0) target = $region61
    $region60: #{conv_qnet_forward.1} parent=1 // pred_region
      _
    $region61: #{conv_qnet_forward.1} parent=1 // pred_fallthru
      _
    // Predicated region
    $region62: #{conv_qnet_forward.1} parent=1 // pred_check
      _
    $region63: #{conv_qnet_forward.1} parent=1 // pred_check_branch
      %61 = sbr.rel (0) target = $region65
    $region64: #{conv_qnet_forward.1} parent=1 // pred_region
      _
    $region65: #{conv_qnet_forward.1} parent=1 // pred_fallthru
      _
    // Predicated region
    $region66: #{conv_qnet_forward.1} parent=1 // pred_check
      _
    $region67: #{conv_qnet_forward.1} parent=1 // pred_check_branch
      %63 = sbr.rel (0) target = $region69
    $region68: #{conv_qnet_forward.1} parent=1 // pred_region
      _
    $region69: #{conv_qnet_forward.1} parent=1 // pred_fallthru
      _
    // Predicated region
    $region70: #{conv_qnet_forward.1} parent=1 // pred_check
      _
    $region71: #{conv_qnet_forward.1} parent=1 // pred_check_branch
      %65 = sbr.rel (0) target = $region73
    $region72: #{conv_qnet_forward.1} parent=1 // pred_region
      _
    $region73: #{conv_qnet_forward.1} parent=1 // pred_fallthru
      _
    // Predicated region
    $region74: #{conv_qnet_forward.1} parent=1 // pred_check
      _
    $region75: #{conv_qnet_forward.1} parent=1 // pred_check_branch
      %67 = sbr.rel (0) target = $region77
    $region76: #{conv_qnet_forward.1} parent=1 // pred_region
      _
    $region77: #{conv_qnet_forward.1} parent=1 // pred_fallthru
      _
    // Predicated region
    $region78: #{conv_qnet_forward.1} parent=1 // pred_check
      _
    $region79: #{conv_qnet_forward.1} parent=1 // pred_check_branch
      %69 = sbr.rel (0) target = $region81
    $region80: #{conv_qnet_forward.1} parent=1 // pred_region
      _
    $region81: #{conv_qnet_forward.1} parent=1 // pred_fallthru
      _
    %v70 = vld [vmem:[%s0] sm:$0xff]
    %v71 = vld [vmem:[%s4] sm:$0xff]
    %v72 = vld [vmem:[%s4 + $0x8] sm:$0xff]
    %v73 = vld [vmem:[%s4 + $0x10] sm:$0xff]
    %v74 = vld [vmem:[%s4 + $0x18] sm:$0xff]
    %v75 = vld [vmem:[%s4 + $0x20] sm:$0xff]
    %v76 = vld [vmem:[%s4 + $0x28] sm:$0xff]
    %v77 = vld [vmem:[%s4 + $0x30] sm:$0xff]
    %v78 = vld [vmem:[%s4 + $0x38] sm:$0xff]
    %v79 = vld [vmem:[%s4 + $0x40] sm:$0xff]
    %v80 = vld [vmem:[%s4 + $0x48] sm:$0xff]
    %v81 = vld [vmem:[%s4 + $0x50] sm:$0xff]
    %v82 = vld [vmem:[%s4 + $0x58] sm:$0xff]
    %v83 = vld [vmem:[%s4 + $0x60] sm:$0xff]
    %v84 = vld [vmem:[%s4 + $0x68] sm:$0xff]
    %v85 = vld [vmem:[%s4 + $0x70] sm:$0xff]
    %v86 = vld [vmem:[%s4 + $0x78] sm:$0xff]
    %v87 = vld [vmem:[%s4 + $0x80] sm:$0xff]
    %v88 = vld [vmem:[%s4 + $0x88] sm:$0xff]
    %v89 = vld [vmem:[%s4 + $0x90] sm:$0xff]
    %v90 = vld [vmem:[%s4 + $0x98] sm:$0xff]
    %v91 = vld [vmem:[%s4 + $0xa0] sm:$0xff]
    %v92 = vld [vmem:[%s4 + $0xa8] sm:$0xff]
    %v93 = vld [vmem:[%s4 + $0xb0] sm:$0xff]
    %v94 = vld [vmem:[%s4 + $0xb8] sm:$0xff]
    %v95 = vld [vmem:[%s4 + $0xc0] sm:$0xff]
    %v96 = vld [vmem:[%s4 + $0xc8] sm:$0xff]
    %v97 = vld [vmem:[%s4 + $0xd0] sm:$0xff]
    %v98 = vld [vmem:[%s4 + $0xd8] sm:$0xff]
    %v99 = vld [vmem:[%s4 + $0xe0] sm:$0xff]
    %v100 = vld [vmem:[%s4 + $0xe8] sm:$0xff]
    %v101 = vld [vmem:[%s4 + $0xf0] sm:$0xff]
    %v102 = vld [vmem:[%s4 + $0xf8] sm:$0xff]
    %v103 = vld [vmem:[%s4 + $0x100] sm:$0xff]
    %v104 = vld [vmem:[%s4 + $0x108] sm:$0xff]
    %v105 = vld [vmem:[%s4 + $0x110] sm:$0xff]
    %v106 = vld [vmem:[%s4 + $0x118] sm:$0xff]
    %v107 = vld [vmem:[%s4 + $0x120] sm:$0x7]
    %v108 = vld [vmem:[%s4 + $0x128] sm:$0x7]
    %v109 = vld [vmem:[%s5] sm:$0x3]
    %v111 = vlaneseq
    %v112 = vshrl.u32 %v111, 7
    %v113 = vsub.s32 0, %v112
    %v114 = vrot.slane %v109, %v113
    %v115 = vlaneseq
    %v116 = vshrl.u32 %v115, 7
    %v117 = vsub.s32 1, %v116
    %v118 = vrot.slane %v109, %v117
    %v122 = vcombine.high %v70, %v70
    %vm123 = vcmask 154624
    %v124 = vsel %vm123, %v122, 0
    %vm126 = vcmask 1042432
    %v128 = vsel %vm126, %v107, 0
    %v131 = vsel %vm126, %v108, 0
    %133 = vmatprep.subr.mxu0 %v72
    %134 = vmatpush1.msra.mxu0 %v71
    %135 = vmatprep.subr.mxu0 %v74
    %136 = vmatpush1.msra.mxu0 %v73
    %137 = vmatprep.subr.mxu0 %v76
    %138 = vmatpush1.msra.mxu0 %v75
    %139 = vmatprep.subr.mxu0 %v78
    %140 = vmatpush1.msra.mxu0 %v77
    %141 = vmatprep.subr.mxu0 %v80
    %142 = vmatpush1.msra.mxu0 %v79
    %143 = vmatprep.subr.mxu0 %v82
    %144 = vmatpush1.msra.mxu0 %v81
    %145 = vmatprep.subr.mxu0 %v84
    %146 = vmatpush1.msra.mxu0 %v83
    %147 = vmatprep.subr.mxu0 %v86
    %148 = vmatpush1.msra.mxu0 %v85
    %149 = vmatprep.subr.mxu0 %v88
    %150 = vmatpush1.msra.mxu0 %v87
    %151 = vmatprep.subr.mxu0 %v90
    %152 = vmatpush1.msra.mxu0 %v89
    %153 = vmatprep.subr.mxu0 %v92
    %154 = vmatpush1.msra.mxu0 %v91
    %155 = vmatprep.subr.mxu0 %v94
    %156 = vmatpush1.msra.mxu0 %v93
    %157 = vmatprep.subr.mxu0 %v96
    %158 = vmatpush1.msra.mxu0 %v95
    %159 = vmatprep.subr.mxu0 %v98
    %160 = vmatpush1.msra.mxu0 %v97
    %161 = vmatprep.subr.mxu0 %v100
    %162 = vmatpush1.msra.mxu0 %v99
    %163 = vmatprep.subr.mxu0 %v102
    %164 = vmatpush1.msra.mxu0 %v101
    %165 = vmatprep.subr.mxu0 %v104
    %166 = vmatpush1.msra.mxu0 %v103
    %167 = vmatprep.subr.mxu0 %v106
    %168 = vmatpush1.msra.mxu0 %v105
    %169 = vmatprep.subr.mxu0 %v131
    %170 = vmatpush1.msra.mxu0 %v128
    %171 = vmatprep.subr.mxu0 0.0
    %172 = vmatpush1.msra.mxu0 0.0
    %173 = vmatprep.subr.mxu0 0.0
    %174 = vmatpush1.msra.mxu0 0.0
    %175 = vmatprep.subr.mxu0 0.0
    %176 = vmatpush1.msra.mxu0 0.0
    %177 = vmatprep.subr.mxu0 0.0
    %178 = vmatpush1.msra.mxu0 0.0
    %179 = vmatprep.subr.mxu0 0.0
    %180 = vmatpush1.msra.mxu0 0.0
    %181 = vmatprep.subr.mxu0 0.0
    %182 = vmatpush1.msra.mxu0 0.0
    %183 = vmatprep.subr.mxu0 0.0
    %184 = vmatpush1.msra.mxu0 0.0
    %185 = vmatprep.subr.mxu0 0.0
    %186 = vmatpush1.msra.mxu0 0.0
    %187 = vmatprep.subr.mxu0 0.0
    %188 = vmatpush1.msra.mxu0 0.0
    %189 = vmatprep.subr.mxu0 0.0
    %190 = vmatpush1.msra.mxu0 0.0
    %191 = vmatprep.subr.mxu0 0.0
    %192 = vmatpush1.msra.mxu0 0.0
    %193 = vmatprep.subr.mxu0 0.0
    %194 = vmatpush1.msra.mxu0 0.0
    %195 = vmatprep.subr.mxu0 0.0
    %196 = vmatpush1.msra.mxu0 0.0
    %197 = vmatprep.mubr.f32.mxu0 %v124
    %198 = vmatmul.mubr.f32.gmra.mrb[0].mxu0 %v70
    %v199 = vpop.f32.mrb[0].mxu0
    %v200 = vadd.f32 %v114, %v199
    %v201 = vpop.f32.mrb[0].mxu0
    %v202 = vadd.f32 %v118, %v201
    %203 = vdwg.mxu0
    %v204 = vmax.f32 %v200, 0.0
    %v205 = vmax.f32 %v202, 0.0
    %v206 = vld [vmem:[%s6] sm:$0xff]
    %v207 = vld [vmem:[%s6 + $0x8] sm:$0xff]
    %v208 = vld [vmem:[%s6 + $0x10] sm:$0xff]
    %v209 = vld [vmem:[%s6 + $0x18] sm:$0xff]
    %v210 = vld [vmem:[%s6 + $0x20] sm:$0xff]
    %v211 = vld [vmem:[%s6 + $0x28] sm:$0xff]
    %v212 = vld [vmem:[%s6 + $0x30] sm:$0xff]
    %v213 = vld [vmem:[%s6 + $0x38] sm:$0xff]
    %v214 = vld [vmem:[%s6 + $0x40] sm:$0xff]
    %v215 = vld [vmem:[%s6 + $0x48] sm:$0xff]
    %v216 = vld [vmem:[%s6 + $0x50] sm:$0xff]
    %v217 = vld [vmem:[%s6 + $0x58] sm:$0xff]
    %v218 = vld [vmem:[%s6 + $0x60] sm:$0xff]
    %v219 = vld [vmem:[%s6 + $0x68] sm:$0xff]
    %v220 = vld [vmem:[%s6 + $0x70] sm:$0xff]
    %v221 = vld [vmem:[%s6 + $0x78] sm:$0xff]
    %v222 = vld [vmem:[%s6 + $0x80] sm:$0xff]
    %v223 = vld [vmem:[%s6 + $0x88] sm:$0xff]
    %v224 = vld [vmem:[%s6 + $0x90] sm:$0xff]
    %v225 = vld [vmem:[%s6 + $0x98] sm:$0xff]
    %v226 = vld [vmem:[%s6 + $0xa0] sm:$0xff]
    %v227 = vld [vmem:[%s6 + $0xa8] sm:$0xff]
    %v228 = vld [vmem:[%s6 + $0xb0] sm:$0xff]
    %v229 = vld [vmem:[%s6 + $0xb8] sm:$0xff]
    %v230 = vld [vmem:[%s6 + $0xc0] sm:$0xff]
    %v231 = vld [vmem:[%s6 + $0xc8] sm:$0xff]
    %v232 = vld [vmem:[%s6 + $0xd0] sm:$0xff]
    %v233 = vld [vmem:[%s6 + $0xd8] sm:$0xff]
    %v234 = vld [vmem:[%s6 + $0xe0] sm:$0xff]
    %v235 = vld [vmem:[%s6 + $0xe8] sm:$0xff]
    %v236 = vld [vmem:[%s6 + $0xf0] sm:$0xff]
    %v237 = vld [vmem:[%s6 + $0xf8] sm:$0xff]
    %v238 = vld [vmem:[%s6 + $0x100] sm:$0xff]
    %v239 = vld [vmem:[%s6 + $0x108] sm:$0xff]
    %v240 = vld [vmem:[%s6 + $0x110] sm:$0xff]
    %v241 = vld [vmem:[%s6 + $0x118] sm:$0xff]
    %v242 = vld [vmem:[%s6 + $0x120] sm:$0xff]
    %v243 = vld [vmem:[%s6 + $0x128] sm:$0xff]
    %v244 = vld [vmem:[%s6 + $0x130] sm:$0xff]
    %v245 = vld [vmem:[%s6 + $0x138] sm:$0xff]
    %v246 = vld [vmem:[%s6 + $0x140] sm:$0xff]
    %v247 = vld [vmem:[%s6 + $0x148] sm:$0xff]
    %v248 = vld [vmem:[%s6 + $0x150] sm:$0xff]
    %v249 = vld [vmem:[%s6 + $0x158] sm:$0xff]
    %v250 = vld [vmem:[%s6 + $0x160] sm:$0xff]
    %v251 = vld [vmem:[%s6 + $0x168] sm:$0xff]
    %v252 = vld [vmem:[%s6 + $0x170] sm:$0xff]
    %v253 = vld [vmem:[%s6 + $0x178] sm:$0xff]
    %v254 = vld [vmem:[%s6 + $0x180] sm:$0xff]
    %v255 = vld [vmem:[%s6 + $0x188] sm:$0xff]
    %v256 = vld [vmem:[%s6 + $0x190] sm:$0xff]
    %v257 = vld [vmem:[%s6 + $0x198] sm:$0xff]
    %v258 = vld [vmem:[%s6 + $0x1a0] sm:$0xff]
    %v259 = vld [vmem:[%s6 + $0x1a8] sm:$0xff]
    %v260 = vld [vmem:[%s6 + $0x1b0] sm:$0xff]
    %v261 = vld [vmem:[%s6 + $0x1b8] sm:$0xff]
    %v262 = vld [vmem:[%s6 + $0x1c0] sm:$0xff]
    %v263 = vld [vmem:[%s6 + $0x1c8] sm:$0xff]
    %v264 = vld [vmem:[%s6 + $0x1d0] sm:$0xff]
    %v265 = vld [vmem:[%s6 + $0x1d8] sm:$0xff]
    %v266 = vld [vmem:[%s6 + $0x1e0] sm:$0xff]
    %v267 = vld [vmem:[%s6 + $0x1e8] sm:$0xff]
    %v268 = vld [vmem:[%s6 + $0x1f0] sm:$0xff]
    %v269 = vld [vmem:[%s6 + $0x1f8] sm:$0xff]
    %v270 = vld [vmem:[%s7] sm:$0x3]
    %v272 = vlaneseq
    %v273 = vshrl.u32 %v272, 7
    %v274 = vsub.s32 0, %v273
    %v275 = vrot.slane %v270, %v274
    %v276 = vlaneseq
    %v277 = vshrl.u32 %v276, 7
    %v278 = vsub.s32 1, %v277
    %v279 = vrot.slane %v270, %v278
    %282 = vmatprep.subr.mxu0 %v207
    %283 = vmatpush1.msra.mxu0 %v206
    %284 = vmatprep.subr.mxu0 %v209
    %285 = vmatpush1.msra.mxu0 %v208
    %286 = vmatprep.subr.mxu0 %v211
    %287 = vmatpush1.msra.mxu0 %v210
    %288 = vmatprep.subr.mxu0 %v213
    %289 = vmatpush1.msra.mxu0 %v212
    %290 = vmatprep.subr.mxu0 %v215
    %291 = vmatpush1.msra.mxu0 %v214
    %292 = vmatprep.subr.mxu0 %v217
    %293 = vmatpush1.msra.mxu0 %v216
    %294 = vmatprep.subr.mxu0 %v219
    %295 = vmatpush1.msra.mxu0 %v218
    %296 = vmatprep.subr.mxu0 %v221
    %297 = vmatpush1.msra.mxu0 %v220
    %298 = vmatprep.subr.mxu0 %v223
    %299 = vmatpush1.msra.mxu0 %v222
    %300 = vmatprep.subr.mxu0 %v225
    %301 = vmatpush1.msra.mxu0 %v224
    %302 = vmatprep.subr.mxu0 %v227
    %303 = vmatpush1.msra.mxu0 %v226
    %304 = vmatprep.subr.mxu0 %v229
    %305 = vmatpush1.msra.mxu0 %v228
    %306 = vmatprep.subr.mxu0 %v231
    %307 = vmatpush1.msra.mxu0 %v230
    %308 = vmatprep.subr.mxu0 %v233
    %309 = vmatpush1.msra.mxu0 %v232
    %310 = vmatprep.subr.mxu0 %v235
    %311 = vmatpush1.msra.mxu0 %v234
    %312 = vmatprep.subr.mxu0 %v237
    %313 = vmatpush1.msra.mxu0 %v236
    %314 = vmatprep.subr.mxu0 %v239
    %315 = vmatpush1.msra.mxu0 %v238
    %316 = vmatprep.subr.mxu0 %v241
    %317 = vmatpush1.msra.mxu0 %v240
    %318 = vmatprep.subr.mxu0 %v243
    %319 = vmatpush1.msra.mxu0 %v242
    %320 = vmatprep.subr.mxu0 %v245
    %321 = vmatpush1.msra.mxu0 %v244
    %322 = vmatprep.subr.mxu0 %v247
    %323 = vmatpush1.msra.mxu0 %v246
    %324 = vmatprep.subr.mxu0 %v249
    %325 = vmatpush1.msra.mxu0 %v248
    %326 = vmatprep.subr.mxu0 %v251
    %327 = vmatpush1.msra.mxu0 %v250
    %328 = vmatprep.subr.mxu0 %v253
    %329 = vmatpush1.msra.mxu0 %v252
    %330 = vmatprep.subr.mxu0 %v255
    %331 = vmatpush1.msra.mxu0 %v254
    %332 = vmatprep.subr.mxu0 %v257
    %333 = vmatpush1.msra.mxu0 %v256
    %334 = vmatprep.subr.mxu0 %v259
    %335 = vmatpush1.msra.mxu0 %v258
    %336 = vmatprep.subr.mxu0 %v261
    %337 = vmatpush1.msra.mxu0 %v260
    %338 = vmatprep.subr.mxu0 %v263
    %339 = vmatpush1.msra.mxu0 %v262
    %340 = vmatprep.subr.mxu0 %v265
    %341 = vmatpush1.msra.mxu0 %v264
    %342 = vmatprep.subr.mxu0 %v267
    %343 = vmatpush1.msra.mxu0 %v266
    %344 = vmatprep.subr.mxu0 %v269
    %345 = vmatpush1.msra.mxu0 %v268
    %346 = vmatprep.mubr.f32.mxu0 %v205
    %347 = vmatmul.mubr.f32.gmra.mrb[0].mxu0 %v204
    %v348 = vpop.f32.mrb[0].mxu0
    %v349 = vadd.f32 %v275, %v348
    %v350 = vpop.f32.mrb[0].mxu0
    %v351 = vadd.f32 %v279, %v350
    %352 = vdwg.mxu0
    %v353 = vmax.f32 %v349, 0.0
    %v354 = vmax.f32 %v351, 0.0
    %v355 = vld [vmem:[%s8] sm:$0xff]
    %v356 = vld [vmem:[%s8 + $0x8] sm:$0xff]
    %v357 = vld [vmem:[%s8 + $0x10] sm:$0xff]
    %v358 = vld [vmem:[%s8 + $0x18] sm:$0xff]
    %v359 = vld [vmem:[%s8 + $0x20] sm:$0xff]
    %v360 = vld [vmem:[%s8 + $0x28] sm:$0xff]
    %v361 = vld [vmem:[%s8 + $0x30] sm:$0xff]
    %v362 = vld [vmem:[%s8 + $0x38] sm:$0xff]
    %v363 = vld [vmem:[%s8 + $0x40] sm:$0xff]
    %v364 = vld [vmem:[%s8 + $0x48] sm:$0xff]
    %v365 = vld [vmem:[%s8 + $0x50] sm:$0xff]
    %v366 = vld [vmem:[%s8 + $0x58] sm:$0xff]
    %v367 = vld [vmem:[%s8 + $0x60] sm:$0xff]
    %v368 = vld [vmem:[%s8 + $0x68] sm:$0xff]
    %v369 = vld [vmem:[%s8 + $0x70] sm:$0xff]
    %v370 = vld [vmem:[%s8 + $0x78] sm:$0xff]
    %v371 = vld [vmem:[%s8 + $0x80] sm:$0xff]
    %v372 = vld [vmem:[%s8 + $0x88] sm:$0xff]
    %v373 = vld [vmem:[%s9] sm:$0x1]
    %v375 = vlaneseq
    %v376 = vshrl.u32 %v375, 7
    %v377 = vsub.s32 0, %v376
    %v378 = vrot.slane %v373, %v377
    %vm380 = vcmask 130048
    %v382 = vsel %vm380, %v354, 0
    %384 = vmatprep.subr.mxu0 0.0
    %385 = vmatpush1.msra.mxu0 %v355
    %386 = vmatprep.subr.mxu0 0.0
    %387 = vmatpush1.msra.mxu0 %v356
    %388 = vmatprep.subr.mxu0 0.0
    %389 = vmatpush1.msra.mxu0 %v357
    %390 = vmatprep.subr.mxu0 0.0
    %391 = vmatpush1.msra.mxu0 %v358
    %392 = vmatprep.subr.mxu0 0.0
    %393 = vmatpush1.msra.mxu0 %v359
    %394 = vmatprep.subr.mxu0 0.0
    %395 = vmatpush1.msra.mxu0 %v360
    %396 = vmatprep.subr.mxu0 0.0
    %397 = vmatpush1.msra.mxu0 %v361
    %398 = vmatprep.subr.mxu0 0.0
    %399 = vmatpush1.msra.mxu0 %v362
    %400 = vmatprep.subr.mxu0 0.0
    %401 = vmatpush1.msra.mxu0 %v363
    %402 = vmatprep.subr.mxu0 0.0
    %403 = vmatpush1.msra.mxu0 %v364
    %404 = vmatprep.subr.mxu0 0.0
    %405 = vmatpush1.msra.mxu0 %v365
    %406 = vmatprep.subr.mxu0 0.0
    %407 = vmatpush1.msra.mxu0 %v366
    %408 = vmatprep.subr.mxu0 0.0
    %409 = vmatpush1.msra.mxu0 %v367
    %410 = vmatprep.subr.mxu0 0.0
    %411 = vmatpush1.msra.mxu0 %v368
    %412 = vmatprep.subr.mxu0 0.0
    %413 = vmatpush1.msra.mxu0 %v369
    %414 = vmatprep.subr.mxu0 0.0
    %415 = vmatpush1.msra.mxu0 %v370
    %416 = vmatprep.subr.mxu0 0.0
    %417 = vmatpush1.msra.mxu0 %v371
    %418 = vmatprep.subr.mxu0 0.0
    %419 = vmatpush1.msra.mxu0 %v372
    %420 = vmatprep.subr.mxu0 0.0
    %421 = vmatpush1.msra.mxu0 0.0
    %422 = vmatprep.subr.mxu0 0.0
    %423 = vmatpush1.msra.mxu0 0.0
    %424 = vmatprep.subr.mxu0 0.0
    %425 = vmatpush1.msra.mxu0 0.0
    %426 = vmatprep.subr.mxu0 0.0
    %427 = vmatpush1.msra.mxu0 0.0
    %428 = vmatprep.subr.mxu0 0.0
    %429 = vmatpush1.msra.mxu0 0.0
    %430 = vmatprep.subr.mxu0 0.0
    %431 = vmatpush1.msra.mxu0 0.0
    %432 = vmatprep.subr.mxu0 0.0
    %433 = vmatpush1.msra.mxu0 0.0
    %434 = vmatprep.subr.mxu0 0.0
    %435 = vmatpush1.msra.mxu0 0.0
    %436 = vmatprep.subr.mxu0 0.0
    %437 = vmatpush1.msra.mxu0 0.0
    %438 = vmatprep.subr.mxu0 0.0
    %439 = vmatpush1.msra.mxu0 0.0
    %440 = vmatprep.subr.mxu0 0.0
    %441 = vmatpush1.msra.mxu0 0.0
    %442 = vmatprep.subr.mxu0 0.0
    %443 = vmatpush1.msra.mxu0 0.0
    %444 = vmatprep.subr.mxu0 0.0
    %445 = vmatpush1.msra.mxu0 0.0
    %446 = vmatprep.subr.mxu0 0.0
    %447 = vmatpush1.msra.mxu0 0.0
    %448 = vmatprep.mubr.f32.mxu0 %v382
    %449 = vmatmul.mubr.f32.gmra.mrb[0].mxu0 %v353
    %v450 = vpop.f32.mrb[0].mxu0
    %v451 = vadd.f32 %v378, %v450
    %v452 = vpop.f32.mrb[0].mxu0
    %453 = vdwg.mxu0
    %v454 = vmax.f32 %v451, 0.0
    %v455 = vld [vmem:[%s10] sm:$0xff]
    %v456 = vld [vmem:[%s10 + $0x8] sm:$0xff]
    %v457 = vld [vmem:[%s10 + $0x10] sm:$0xff]
    %v458 = vld [vmem:[%s10 + $0x18] sm:$0xff]
    %v459 = vld [vmem:[%s1] sm:$0xf]
    %v460 = vld [vmem:[%s11] sm:$0x1]
    %462 = vset.pattern.permute.xlu0 0
    %463 = vperm.xlu0 %462, %v459
    %v464 = vpop.permute.xlu0 %463
    %v467 = vlaneseq
    %v468 = vshrl.u32 %v467, 7
    %v469 = vsub.s32 0, %v468
    %v470 = vrot.slane %v460, %v469
    %v472 = vmul.f32 %v464, %v470
    %vm473 = vcmask 261120
    %v475 = vsel %vm473, %v454, 0
    %477 = vmatprep.subr.mxu0 0.0
    %478 = vmatpush1.msra.mxu0 %v455
    %479 = vmatprep.subr.mxu0 0.0
    %480 = vmatpush1.msra.mxu0 %v456
    %481 = vmatprep.subr.mxu0 0.0
    %482 = vmatpush1.msra.mxu0 %v457
    %483 = vmatprep.subr.mxu0 0.0
    %484 = vmatpush1.msra.mxu0 %v458
    %485 = vmatprep.subr.mxu0 0.0
    %486 = vmatpush1.msra.mxu0 0.0
    %487 = vmatprep.subr.mxu0 0.0
    %488 = vmatpush1.msra.mxu0 0.0
    %489 = vmatprep.subr.mxu0 0.0
    %490 = vmatpush1.msra.mxu0 0.0
    %491 = vmatprep.subr.mxu0 0.0
    %492 = vmatpush1.msra.mxu0 0.0
    %493 = vmatprep.subr.mxu0 0.0
    %494 = vmatpush1.msra.mxu0 0.0
    %495 = vmatprep.subr.mxu0 0.0
    %496 = vmatpush1.msra.mxu0 0.0
    %497 = vmatprep.subr.mxu0 0.0
    %498 = vmatpush1.msra.mxu0 0.0
    %499 = vmatprep.subr.mxu0 0.0
    %500 = vmatpush1.msra.mxu0 0.0
    %501 = vmatprep.subr.mxu0 0.0
    %502 = vmatpush1.msra.mxu0 0.0
    %503 = vmatprep.subr.mxu0 0.0
    %504 = vmatpush1.msra.mxu0 0.0
    %505 = vmatprep.subr.mxu0 0.0
    %506 = vmatpush1.msra.mxu0 0.0
    %507 = vmatprep.subr.mxu0 0.0
    %508 = vmatpush1.msra.mxu0 0.0
    %509 = vmatprep.subr.mxu0 0.0
    %510 = vmatpush1.msra.mxu0 0.0
    %511 = vmatprep.subr.mxu0 0.0
    %512 = vmatpush1.msra.mxu0 0.0
    %513 = vmatprep.subr.mxu0 0.0
    %514 = vmatpush1.msra.mxu0 0.0
    %515 = vmatprep.subr.mxu0 0.0
    %516 = vmatpush1.msra.mxu0 0.0
    %517 = vmatprep.subr.mxu0 0.0
    %518 = vmatpush1.msra.mxu0 0.0
    %519 = vmatprep.subr.mxu0 0.0
    %520 = vmatpush1.msra.mxu0 0.0
    %521 = vmatprep.subr.mxu0 0.0
    %522 = vmatpush1.msra.mxu0 0.0
    %523 = vmatprep.subr.mxu0 0.0
    %524 = vmatpush1.msra.mxu0 0.0
    %525 = vmatprep.subr.mxu0 0.0
    %526 = vmatpush1.msra.mxu0 0.0
    %527 = vmatprep.subr.mxu0 0.0
    %528 = vmatpush1.msra.mxu0 0.0
    %529 = vmatprep.subr.mxu0 0.0
    %530 = vmatpush1.msra.mxu0 0.0
    %531 = vmatprep.subr.mxu0 0.0
    %532 = vmatpush1.msra.mxu0 0.0
    %533 = vmatprep.subr.mxu0 0.0
    %534 = vmatpush1.msra.mxu0 0.0
    %535 = vmatprep.subr.mxu0 0.0
    %536 = vmatpush1.msra.mxu0 0.0
    %537 = vmatprep.subr.mxu0 0.0
    %538 = vmatpush1.msra.mxu0 0.0
    %539 = vmatprep.subr.mxu0 0.0
    %540 = vmatpush1.msra.mxu0 0.0
    %541 = vmatprep.mubr.f32.mxu0 0.0
    %542 = vmatmul.mubr.f32.gmra.mrb[0].mxu0 %v475
    %v543 = vpop.f32.mrb[0].mxu0
    %v544 = vadd.f32 %v472, %v543
    %v545 = vpop.f32.mrb[0].mxu0
    %546 = vdwg.mxu0
    %v547 = vld [vmem:[%s12] sm:$0x1]
    %v549 = vlaneseq
    %v550 = vshrl.u32 %v549, 7
    %v551 = vsub.s32 0, %v550
    %v552 = vrot.slane %v547, %v551
    %v554 = vadd.f32 %v544, %v552
    %v555 = vmax.f32 %v554, 0.0
    %v556 = vld [vmem:[%s13] sm:$0xff]
    %v557 = vld [vmem:[%s13 + $0x8] sm:$0xff]
    %v558 = vld [vmem:[%s13 + $0x10] sm:$0xff]
    %v559 = vld [vmem:[%s13 + $0x18] sm:$0xff]
    %v560 = vld [vmem:[%s13 + $0x20] sm:$0xff]
    %v561 = vld [vmem:[%s13 + $0x28] sm:$0xff]
    %v562 = vld [vmem:[%s13 + $0x30] sm:$0xff]
    %v563 = vld [vmem:[%s13 + $0x38] sm:$0xff]
    %v564 = vld [vmem:[%s13 + $0x40] sm:$0xff]
    %v565 = vld [vmem:[%s13 + $0x48] sm:$0xff]
    %v566 = vld [vmem:[%s13 + $0x50] sm:$0xff]
    %v567 = vld [vmem:[%s13 + $0x58] sm:$0xff]
    %v568 = vld [vmem:[%s13 + $0x60] sm:$0xff]
    %v569 = vld [vmem:[%s13 + $0x68] sm:$0xff]
    %v570 = vld [vmem:[%s13 + $0x70] sm:$0xff]
    %v571 = vld [vmem:[%s13 + $0x78] sm:$0xff]
    %v572 = vld [vmem:[%s14] sm:$0x1]
    %v574 = vlaneseq
    %v575 = vshrl.u32 %v574, 7
    %v576 = vsub.s32 0, %v575
    %v577 = vrot.slane %v572, %v576
    %579 = vmatprep.subr.mxu0 0.0
    %580 = vmatpush1.msra.mxu0 %v556
    %581 = vmatprep.subr.mxu0 0.0
    %582 = vmatpush1.msra.mxu0 %v557
    %583 = vmatprep.subr.mxu0 0.0
    %584 = vmatpush1.msra.mxu0 %v558
    %585 = vmatprep.subr.mxu0 0.0
    %586 = vmatpush1.msra.mxu0 %v559
    %587 = vmatprep.subr.mxu0 0.0
    %588 = vmatpush1.msra.mxu0 %v560
    %589 = vmatprep.subr.mxu0 0.0
    %590 = vmatpush1.msra.mxu0 %v561
    %591 = vmatprep.subr.mxu0 0.0
    %592 = vmatpush1.msra.mxu0 %v562
    %593 = vmatprep.subr.mxu0 0.0
    %594 = vmatpush1.msra.mxu0 %v563
    %595 = vmatprep.subr.mxu0 0.0
    %596 = vmatpush1.msra.mxu0 %v564
    %597 = vmatprep.subr.mxu0 0.0
    %598 = vmatpush1.msra.mxu0 %v565
    %599 = vmatprep.subr.mxu0 0.0
    %600 = vmatpush1.msra.mxu0 %v566
    %601 = vmatprep.subr.mxu0 0.0
    %602 = vmatpush1.msra.mxu0 %v567
    %603 = vmatprep.subr.mxu0 0.0
    %604 = vmatpush1.msra.mxu0 %v568
    %605 = vmatprep.subr.mxu0 0.0
    %606 = vmatpush1.msra.mxu0 %v569
    %607 = vmatprep.subr.mxu0 0.0
    %608 = vmatpush1.msra.mxu0 %v570
    %609 = vmatprep.subr.mxu0 0.0
    %610 = vmatpush1.msra.mxu0 %v571
    %611 = vmatprep.subr.mxu0 0.0
    %612 = vmatpush1.msra.mxu0 0.0
    %613 = vmatprep.subr.mxu0 0.0
    %614 = vmatpush1.msra.mxu0 0.0
    %615 = vmatprep.subr.mxu0 0.0
    %616 = vmatpush1.msra.mxu0 0.0
    %617 = vmatprep.subr.mxu0 0.0
    %618 = vmatpush1.msra.mxu0 0.0
    %619 = vmatprep.subr.mxu0 0.0
    %620 = vmatpush1.msra.mxu0 0.0
    %621 = vmatprep.subr.mxu0 0.0
    %622 = vmatpush1.msra.mxu0 0.0
    %623 = vmatprep.subr.mxu0 0.0
    %624 = vmatpush1.msra.mxu0 0.0
    %625 = vmatprep.subr.mxu0 0.0
    %626 = vmatpush1.msra.mxu0 0.0
    %627 = vmatprep.subr.mxu0 0.0
    %628 = vmatpush1.msra.mxu0 0.0
    %629 = vmatprep.subr.mxu0 0.0
    %630 = vmatpush1.msra.mxu0 0.0
    %631 = vmatprep.subr.mxu0 0.0
    %632 = vmatpush1.msra.mxu0 0.0
    %633 = vmatprep.subr.mxu0 0.0
    %634 = vmatpush1.msra.mxu0 0.0
    %635 = vmatprep.subr.mxu0 0.0
    %636 = vmatpush1.msra.mxu0 0.0
    %637 = vmatprep.subr.mxu0 0.0
    %638 = vmatpush1.msra.mxu0 0.0
    %639 = vmatprep.subr.mxu0 0.0
    %640 = vmatpush1.msra.mxu0 0.0
    %641 = vmatprep.subr.mxu0 0.0
    %642 = vmatpush1.msra.mxu0 0.0
    %643 = vmatprep.mubr.f32.mxu0 0.0
    %644 = vmatmul.mubr.f32.gmra.mrb[0].mxu0 %v555
    %v645 = vpop.f32.mrb[0].mxu0
    %v646 = vadd.f32 %v577, %v645
    %v647 = vpop.f32.mrb[0].mxu0
    %648 = vdwg.mxu0
    %v649 = vmax.f32 %v646, 0.0
    %v650 = vld [vmem:[%s15] sm:$0xff]
    %v651 = vld [vmem:[%s15 + $0x8] sm:$0xff]
    %v652 = vld [vmem:[%s15 + $0x10] sm:$0xff]
    %v653 = vld [vmem:[%s15 + $0x18] sm:$0xff]
    %v654 = vld [vmem:[%s15 + $0x20] sm:$0xff]
    %v655 = vld [vmem:[%s15 + $0x28] sm:$0xff]
    %v656 = vld [vmem:[%s15 + $0x30] sm:$0xff]
    %v657 = vld [vmem:[%s15 + $0x38] sm:$0xff]
    %v658 = vld [vmem:[%s15 + $0x40] sm:$0xff]
    %v659 = vld [vmem:[%s15 + $0x48] sm:$0xff]
    %v660 = vld [vmem:[%s15 + $0x50] sm:$0xff]
    %v661 = vld [vmem:[%s15 + $0x58] sm:$0xff]
    %v662 = vld [vmem:[%s15 + $0x60] sm:$0xff]
    %v663 = vld [vmem:[%s15 + $0x68] sm:$0xff]
    %v664 = vld [vmem:[%s15 + $0x70] sm:$0xff]
    %v665 = vld [vmem:[%s15 + $0x78] sm:$0xff]
    %v666 = vld [vmem:[%s15 + $0x80] sm:$0xff]
    %v667 = vld [vmem:[%s15 + $0x88] sm:$0xff]
    %v668 = vld [vmem:[%s15 + $0x90] sm:$0xff]
    %v669 = vld [vmem:[%s15 + $0x98] sm:$0xff]
    %v670 = vld [vmem:[%s15 + $0xa0] sm:$0xff]
    %v671 = vld [vmem:[%s15 + $0xa8] sm:$0xff]
    %v672 = vld [vmem:[%s15 + $0xb0] sm:$0xff]
    %v673 = vld [vmem:[%s15 + $0xb8] sm:$0xff]
    %v674 = vld [vmem:[%s15 + $0xc0] sm:$0xff]
    %v675 = vld [vmem:[%s15 + $0xc8] sm:$0xff]
    %v676 = vld [vmem:[%s15 + $0xd0] sm:$0xff]
    %v677 = vld [vmem:[%s15 + $0xd8] sm:$0xff]
    %v678 = vld [vmem:[%s15 + $0xe0] sm:$0xff]
    %v679 = vld [vmem:[%s15 + $0xe8] sm:$0xff]
    %v680 = vld [vmem:[%s15 + $0xf0] sm:$0xff]
    %v681 = vld [vmem:[%s15 + $0xf8] sm:$0xff]
    %v682 = vld [vmem:[%s17] sm:$0xf]
    %v684 = vlaneseq
    %v685 = vshrl.u32 %v684, 7
    %v686 = vsub.s32 0, %v685
    %v687 = vrot.slane %v682, %v686
    %v688 = vlaneseq
    %v689 = vshrl.u32 %v688, 7
    %v690 = vsub.s32 1, %v689
    %v691 = vrot.slane %v682, %v690
    %v692 = vlaneseq
    %v693 = vshrl.u32 %v692, 7
    %v694 = vsub.s32 2, %v693
    %v695 = vrot.slane %v682, %v694
    %v696 = vlaneseq
    %v697 = vshrl.u32 %v696, 7
    %v698 = vsub.s32 3, %v697
    %v699 = vrot.slane %v682, %v698
    %vm704 = vcmask 523264
    %v706 = vsel %vm704, %v649, 0
    %708 = vmatprep.subr.mxu0 %v651
    %709 = vmatpush1.msra.mxu0 %v650
    %710 = vmatprep.subr.mxu0 %v655
    %711 = vmatpush1.msra.mxu0 %v654
    %712 = vmatprep.subr.mxu0 %v659
    %713 = vmatpush1.msra.mxu0 %v658
    %714 = vmatprep.subr.mxu0 %v663
    %715 = vmatpush1.msra.mxu0 %v662
    %716 = vmatprep.subr.mxu0 %v667
    %717 = vmatpush1.msra.mxu0 %v666
    %718 = vmatprep.subr.mxu0 %v671
    %719 = vmatpush1.msra.mxu0 %v670
    %720 = vmatprep.subr.mxu0 %v675
    %721 = vmatpush1.msra.mxu0 %v674
    %722 = vmatprep.subr.mxu0 %v679
    %723 = vmatpush1.msra.mxu0 %v678
    %724 = vmatprep.subr.mxu0 0.0
    %725 = vmatpush1.msra.mxu0 0.0
    %726 = vmatprep.subr.mxu0 0.0
    %727 = vmatpush1.msra.mxu0 0.0
    %728 = vmatprep.subr.mxu0 0.0
    %729 = vmatpush1.msra.mxu0 0.0
    %730 = vmatprep.subr.mxu0 0.0
    %731 = vmatpush1.msra.mxu0 0.0
    %732 = vmatprep.subr.mxu0 0.0
    %733 = vmatpush1.msra.mxu0 0.0
    %734 = vmatprep.subr.mxu0 0.0
    %735 = vmatpush1.msra.mxu0 0.0
    %736 = vmatprep.subr.mxu0 0.0
    %737 = vmatpush1.msra.mxu0 0.0
    %738 = vmatprep.subr.mxu0 0.0
    %739 = vmatpush1.msra.mxu0 0.0
    %740 = vmatprep.subr.mxu0 0.0
    %741 = vmatpush1.msra.mxu0 0.0
    %742 = vmatprep.subr.mxu0 0.0
    %743 = vmatpush1.msra.mxu0 0.0
    %744 = vmatprep.subr.mxu0 0.0
    %745 = vmatpush1.msra.mxu0 0.0
    %746 = vmatprep.subr.mxu0 0.0
    %747 = vmatpush1.msra.mxu0 0.0
    %748 = vmatprep.subr.mxu0 0.0
    %749 = vmatpush1.msra.mxu0 0.0
    %750 = vmatprep.subr.mxu0 0.0
    %751 = vmatpush1.msra.mxu0 0.0
    %752 = vmatprep.subr.mxu0 0.0
    %753 = vmatpush1.msra.mxu0 0.0
    %754 = vmatprep.subr.mxu0 0.0
    %755 = vmatpush1.msra.mxu0 0.0
    %756 = vmatprep.subr.mxu0 0.0
    %757 = vmatpush1.msra.mxu0 0.0
    %758 = vmatprep.subr.mxu0 0.0
    %759 = vmatpush1.msra.mxu0 0.0
    %760 = vmatprep.subr.mxu0 0.0
    %761 = vmatpush1.msra.mxu0 0.0
    %762 = vmatprep.subr.mxu0 0.0
    %763 = vmatpush1.msra.mxu0 0.0
    %764 = vmatprep.subr.mxu0 0.0
    %765 = vmatpush1.msra.mxu0 0.0
    %766 = vmatprep.subr.mxu0 0.0
    %767 = vmatpush1.msra.mxu0 0.0
    %768 = vmatprep.subr.mxu0 0.0
    %769 = vmatpush1.msra.mxu0 0.0
    %770 = vmatprep.subr.mxu0 0.0
    %771 = vmatpush1.msra.mxu0 0.0
    %772 = vmatprep.mubr.f32.mxu0 0.0
    %773 = vmatmul.mubr.f32.gmra.mrb[0].mxu0 %v706
    %v774 = vpop.f32.mrb[0].mxu0
    %v775 = vadd.f32 %v687, %v774
    %v776 = vpop.f32.mrb[0].mxu0
    %v777 = vadd.f32 %v691, %v776
    %778 = vdwg.mxu0
    %779 = vmatprep.subr.mxu0 %v653
    %780 = vmatpush1.msra.mxu0 %v652
    %781 = vmatprep.subr.mxu0 %v657
    %782 = vmatpush1.msra.mxu0 %v656
    %783 = vmatprep.subr.mxu0 %v661
    %784 = vmatpush1.msra.mxu0 %v660
    %785 = vmatprep.subr.mxu0 %v665
    %786 = vmatpush1.msra.mxu0 %v664
    %787 = vmatprep.subr.mxu0 %v669
    %788 = vmatpush1.msra.mxu0 %v668
    %789 = vmatprep.subr.mxu0 %v673
    %790 = vmatpush1.msra.mxu0 %v672
    %791 = vmatprep.subr.mxu0 %v677
    %792 = vmatpush1.msra.mxu0 %v676
    %793 = vmatprep.subr.mxu0 %v681
    %794 = vmatpush1.msra.mxu0 %v680
    %795 = vmatprep.subr.mxu0 0.0
    %796 = vmatpush1.msra.mxu0 0.0
    %797 = vmatprep.subr.mxu0 0.0
    %798 = vmatpush1.msra.mxu0 0.0
    %799 = vmatprep.subr.mxu0 0.0
    %800 = vmatpush1.msra.mxu0 0.0
    %801 = vmatprep.subr.mxu0 0.0
    %802 = vmatpush1.msra.mxu0 0.0
    %803 = vmatprep.subr.mxu0 0.0
    %804 = vmatpush1.msra.mxu0 0.0
    %805 = vmatprep.subr.mxu0 0.0
    %806 = vmatpush1.msra.mxu0 0.0
    %807 = vmatprep.subr.mxu0 0.0
    %808 = vmatpush1.msra.mxu0 0.0
    %809 = vmatprep.subr.mxu0 0.0
    %810 = vmatpush1.msra.mxu0 0.0
    %811 = vmatprep.subr.mxu0 0.0
    %812 = vmatpush1.msra.mxu0 0.0
    %813 = vmatprep.subr.mxu0 0.0
    %814 = vmatpush1.msra.mxu0 0.0
    %815 = vmatprep.subr.mxu0 0.0
    %816 = vmatpush1.msra.mxu0 0.0
    %817 = vmatprep.subr.mxu0 0.0
    %818 = vmatpush1.msra.mxu0 0.0
    %819 = vmatprep.subr.mxu0 0.0
    %820 = vmatpush1.msra.mxu0 0.0
    %821 = vmatprep.subr.mxu0 0.0
    %822 = vmatpush1.msra.mxu0 0.0
    %823 = vmatprep.subr.mxu0 0.0
    %824 = vmatpush1.msra.mxu0 0.0
    %825 = vmatprep.subr.mxu0 0.0
    %826 = vmatpush1.msra.mxu0 0.0
    %827 = vmatprep.subr.mxu0 0.0
    %828 = vmatpush1.msra.mxu0 0.0
    %829 = vmatprep.subr.mxu0 0.0
    %830 = vmatpush1.msra.mxu0 0.0
    %831 = vmatprep.subr.mxu0 0.0
    %832 = vmatpush1.msra.mxu0 0.0
    %833 = vmatprep.subr.mxu0 0.0
    %834 = vmatpush1.msra.mxu0 0.0
    %835 = vmatprep.subr.mxu0 0.0
    %836 = vmatpush1.msra.mxu0 0.0
    %837 = vmatprep.subr.mxu0 0.0
    %838 = vmatpush1.msra.mxu0 0.0
    %839 = vmatprep.subr.mxu0 0.0
    %840 = vmatpush1.msra.mxu0 0.0
    %841 = vmatprep.subr.mxu0 0.0
    %842 = vmatpush1.msra.mxu0 0.0
    %843 = vmatprep.mubr.f32.mxu0 0.0
    %844 = vmatmul.mubr.f32.gmra.mrb[0].mxu0 %v706
    %v845 = vpop.f32.mrb[0].mxu0
    %v846 = vadd.f32 %v695, %v845
    %v847 = vpop.f32.mrb[0].mxu0
    %v848 = vadd.f32 %v699, %v847
    %849 = vdwg.mxu0
    %v850 = vld [vmem:[%s16] sm:$0xff]
    %v851 = vld [vmem:[%s16 + $0x8] sm:$0xff]
    %v852 = vld [vmem:[%s16 + $0x10] sm:$0xff]
    %v853 = vld [vmem:[%s16 + $0x18] sm:$0xff]
    %v854 = vld [vmem:[%s16 + $0x20] sm:$0xff]
    %v855 = vld [vmem:[%s16 + $0x28] sm:$0xff]
    %v856 = vld [vmem:[%s16 + $0x30] sm:$0xff]
    %v857 = vld [vmem:[%s16 + $0x38] sm:$0xff]
    %v858 = vld [vmem:[%s16 + $0x40] sm:$0xff]
    %v859 = vld [vmem:[%s16 + $0x48] sm:$0xff]
    %v860 = vld [vmem:[%s16 + $0x50] sm:$0xff]
    %v861 = vld [vmem:[%s16 + $0x58] sm:$0xff]
    %v862 = vld [vmem:[%s16 + $0x60] sm:$0xff]
    %v863 = vld [vmem:[%s16 + $0x68] sm:$0xff]
    %v864 = vld [vmem:[%s16 + $0x70] sm:$0xff]
    %v865 = vld [vmem:[%s16 + $0x78] sm:$0xff]
    %v866 = vld [vmem:[%s16 + $0x80] sm:$0xff]
    %v867 = vld [vmem:[%s16 + $0x88] sm:$0xff]
    %v868 = vld [vmem:[%s16 + $0x90] sm:$0xff]
    %v869 = vld [vmem:[%s16 + $0x98] sm:$0xff]
    %v870 = vld [vmem:[%s16 + $0xa0] sm:$0xff]
    %v871 = vld [vmem:[%s16 + $0xa8] sm:$0xff]
    %v872 = vld [vmem:[%s16 + $0xb0] sm:$0xff]
    %v873 = vld [vmem:[%s16 + $0xb8] sm:$0xff]
    %v874 = vld [vmem:[%s16 + $0xc0] sm:$0xff]
    %v875 = vld [vmem:[%s16 + $0xc8] sm:$0xff]
    %v876 = vld [vmem:[%s16 + $0xd0] sm:$0xff]
    %v877 = vld [vmem:[%s16 + $0xd8] sm:$0xff]
    %v878 = vld [vmem:[%s16 + $0xe0] sm:$0xff]
    %v879 = vld [vmem:[%s16 + $0xe8] sm:$0xff]
    %v880 = vld [vmem:[%s16 + $0xf0] sm:$0xff]
    %v881 = vld [vmem:[%s16 + $0xf8] sm:$0xff]
    %v882 = vld [vmem:[%s16 + $0x100] sm:$0xff]
    %v883 = vld [vmem:[%s16 + $0x108] sm:$0xff]
    %v884 = vld [vmem:[%s16 + $0x110] sm:$0xff]
    %v885 = vld [vmem:[%s16 + $0x118] sm:$0xff]
    %v886 = vld [vmem:[%s16 + $0x120] sm:$0xff]
    %v887 = vld [vmem:[%s16 + $0x128] sm:$0xff]
    %v888 = vld [vmem:[%s16 + $0x130] sm:$0xff]
    %v889 = vld [vmem:[%s16 + $0x138] sm:$0xff]
    %v890 = vld [vmem:[%s16 + $0x140] sm:$0xff]
    %v891 = vld [vmem:[%s16 + $0x148] sm:$0xff]
    %v892 = vld [vmem:[%s16 + $0x150] sm:$0xff]
    %v893 = vld [vmem:[%s16 + $0x158] sm:$0xff]
    %v894 = vld [vmem:[%s16 + $0x160] sm:$0xff]
    %v895 = vld [vmem:[%s16 + $0x168] sm:$0xff]
    %v896 = vld [vmem:[%s16 + $0x170] sm:$0xff]
    %v897 = vld [vmem:[%s16 + $0x178] sm:$0xff]
    %v898 = vld [vmem:[%s16 + $0x180] sm:$0xff]
    %v899 = vld [vmem:[%s16 + $0x188] sm:$0xff]
    %v900 = vld [vmem:[%s16 + $0x190] sm:$0xff]
    %v901 = vld [vmem:[%s16 + $0x198] sm:$0xff]
    %v902 = vld [vmem:[%s16 + $0x1a0] sm:$0xff]
    %v903 = vld [vmem:[%s16 + $0x1a8] sm:$0xff]
    %v904 = vld [vmem:[%s16 + $0x1b0] sm:$0xff]
    %v905 = vld [vmem:[%s16 + $0x1b8] sm:$0xff]
    %v906 = vld [vmem:[%s16 + $0x1c0] sm:$0xff]
    %v907 = vld [vmem:[%s16 + $0x1c8] sm:$0xff]
    %v908 = vld [vmem:[%s16 + $0x1d0] sm:$0xff]
    %v909 = vld [vmem:[%s16 + $0x1d8] sm:$0xff]
    %v910 = vld [vmem:[%s16 + $0x1e0] sm:$0xff]
    %v911 = vld [vmem:[%s16 + $0x1e8] sm:$0xff]
    %v912 = vld [vmem:[%s16 + $0x1f0] sm:$0xff]
    %v913 = vld [vmem:[%s16 + $0x1f8] sm:$0xff]
    %v914 = vld [vmem:[%s18] sm:$0xff]
    %v915 = vld [vmem:[%s18 + $0x8] sm:$0xff]
    %v916 = vld [vmem:[%s18 + $0x10] sm:$0xff]
    %v917 = vld [vmem:[%s18 + $0x18] sm:$0xff]
    %v918 = vld [vmem:[%s18 + $0x20] sm:$0xff]
    %v919 = vld [vmem:[%s18 + $0x28] sm:$0xff]
    %v920 = vld [vmem:[%s18 + $0x30] sm:$0xff]
    %v921 = vld [vmem:[%s18 + $0x38] sm:$0xff]
    %v922 = vld [vmem:[%s18 + $0x40] sm:$0xff]
    %v923 = vld [vmem:[%s18 + $0x48] sm:$0xff]
    %v924 = vld [vmem:[%s18 + $0x50] sm:$0xff]
    %v925 = vld [vmem:[%s18 + $0x58] sm:$0xff]
    %v926 = vld [vmem:[%s18 + $0x60] sm:$0xff]
    %v927 = vld [vmem:[%s18 + $0x68] sm:$0xff]
    %v928 = vld [vmem:[%s18 + $0x70] sm:$0xff]
    %v929 = vld [vmem:[%s18 + $0x78] sm:$0xff]
    %v930 = vld [vmem:[%s19] sm:$0x1]
    %v931 = vld [vmem:[%s2] sm:$0x1]
    %v932 = vld [vmem:[%s3] sm:$0x1]
    %933 = vmatprep.subr.mxu0 %v851
    %934 = vmatpush1.msra.mxu0 %v850
    %935 = vmatprep.subr.mxu0 %v855
    %936 = vmatpush1.msra.mxu0 %v854
    %937 = vmatprep.subr.mxu0 %v859
    %938 = vmatpush1.msra.mxu0 %v858
    %939 = vmatprep.subr.mxu0 %v863
    %940 = vmatpush1.msra.mxu0 %v862
    %941 = vmatprep.subr.mxu0 %v867
    %942 = vmatpush1.msra.mxu0 %v866
    %943 = vmatprep.subr.mxu0 %v871
    %944 = vmatpush1.msra.mxu0 %v870
    %945 = vmatprep.subr.mxu0 %v875
    %946 = vmatpush1.msra.mxu0 %v874
    %947 = vmatprep.subr.mxu0 %v879
    %948 = vmatpush1.msra.mxu0 %v878
    %949 = vmatprep.subr.mxu0 %v883
    %950 = vmatpush1.msra.mxu0 %v882
    %951 = vmatprep.subr.mxu0 %v887
    %952 = vmatpush1.msra.mxu0 %v886
    %953 = vmatprep.subr.mxu0 %v891
    %954 = vmatpush1.msra.mxu0 %v890
    %955 = vmatprep.subr.mxu0 %v895
    %956 = vmatpush1.msra.mxu0 %v894
    %957 = vmatprep.subr.mxu0 %v899
    %958 = vmatpush1.msra.mxu0 %v898
    %959 = vmatprep.subr.mxu0 %v903
    %960 = vmatpush1.msra.mxu0 %v902
    %961 = vmatprep.subr.mxu0 %v907
    %962 = vmatpush1.msra.mxu0 %v906
    %963 = vmatprep.subr.mxu0 %v911
    %964 = vmatpush1.msra.mxu0 %v910
    %965 = vmatprep.subr.mxu0 0.0
    %966 = vmatpush1.msra.mxu0 0.0
    %967 = vmatprep.subr.mxu0 0.0
    %968 = vmatpush1.msra.mxu0 0.0
    %969 = vmatprep.subr.mxu0 0.0
    %970 = vmatpush1.msra.mxu0 0.0
    %971 = vmatprep.subr.mxu0 0.0
    %972 = vmatpush1.msra.mxu0 0.0
    %973 = vmatprep.subr.mxu0 0.0
    %974 = vmatpush1.msra.mxu0 0.0
    %975 = vmatprep.subr.mxu0 0.0
    %976 = vmatpush1.msra.mxu0 0.0
    %977 = vmatprep.subr.mxu0 0.0
    %978 = vmatpush1.msra.mxu0 0.0
    %979 = vmatprep.subr.mxu0 0.0
    %980 = vmatpush1.msra.mxu0 0.0
    %981 = vmatprep.subr.mxu0 0.0
    %982 = vmatpush1.msra.mxu0 0.0
    %983 = vmatprep.subr.mxu0 0.0
    %984 = vmatpush1.msra.mxu0 0.0
    %985 = vmatprep.subr.mxu0 0.0
    %986 = vmatpush1.msra.mxu0 0.0
    %987 = vmatprep.subr.mxu0 0.0
    %988 = vmatpush1.msra.mxu0 0.0
    %989 = vmatprep.subr.mxu0 0.0
    %990 = vmatpush1.msra.mxu0 0.0
    %991 = vmatprep.subr.mxu0 0.0
    %992 = vmatpush1.msra.mxu0 0.0
    %993 = vmatprep.subr.mxu0 0.0
    %994 = vmatpush1.msra.mxu0 0.0
    %995 = vmatprep.subr.mxu0 0.0
    %996 = vmatpush1.msra.mxu0 0.0
    %997 = vmatprep.mubr.f32.mxu0 0.0
    %998 = vmatmul.mubr.f32.gmra.mrb[0].mxu0 %v931
    %v999 = vpop.f32.mrb[0].mxu0
    %v1000 = vadd.f32 0.0, %v999
    %v1001 = vpop.f32.mrb[0].mxu0
    %v1002 = vadd.f32 0.0, %v1001
    %1003 = vdwg.mxu0
    %1004 = vmatprep.subr.mxu0 %v853
    %1005 = vmatpush1.msra.mxu0 %v852
    %1006 = vmatprep.subr.mxu0 %v857
    %1007 = vmatpush1.msra.mxu0 %v856
    %1008 = vmatprep.subr.mxu0 %v861
    %1009 = vmatpush1.msra.mxu0 %v860
    %1010 = vmatprep.subr.mxu0 %v865
    %1011 = vmatpush1.msra.mxu0 %v864
    %1012 = vmatprep.subr.mxu0 %v869
    %1013 = vmatpush1.msra.mxu0 %v868
    %1014 = vmatprep.subr.mxu0 %v873
    %1015 = vmatpush1.msra.mxu0 %v872
    %1016 = vmatprep.subr.mxu0 %v877
    %1017 = vmatpush1.msra.mxu0 %v876
    %1018 = vmatprep.subr.mxu0 %v881
    %1019 = vmatpush1.msra.mxu0 %v880
    %1020 = vmatprep.subr.mxu0 %v885
    %1021 = vmatpush1.msra.mxu0 %v884
    %1022 = vmatprep.subr.mxu0 %v889
    %1023 = vmatpush1.msra.mxu0 %v888
    %1024 = vmatprep.subr.mxu0 %v893
    %1025 = vmatpush1.msra.mxu0 %v892
    %1026 = vmatprep.subr.mxu0 %v897
    %1027 = vmatpush1.msra.mxu0 %v896
    %1028 = vmatprep.subr.mxu0 %v901
    %1029 = vmatpush1.msra.mxu0 %v900
    %1030 = vmatprep.subr.mxu0 %v905
    %1031 = vmatpush1.msra.mxu0 %v904
    %1032 = vmatprep.subr.mxu0 %v909
    %1033 = vmatpush1.msra.mxu0 %v908
    %1034 = vmatprep.subr.mxu0 %v913
    %1035 = vmatpush1.msra.mxu0 %v912
    %1036 = vmatprep.subr.mxu0 0.0
    %1037 = vmatpush1.msra.mxu0 0.0
    %1038 = vmatprep.subr.mxu0 0.0
    %1039 = vmatpush1.msra.mxu0 0.0
    %1040 = vmatprep.subr.mxu0 0.0
    %1041 = vmatpush1.msra.mxu0 0.0
    %1042 = vmatprep.subr.mxu0 0.0
    %1043 = vmatpush1.msra.mxu0 0.0
    %1044 = vmatprep.subr.mxu0 0.0
    %1045 = vmatpush1.msra.mxu0 0.0
    %1046 = vmatprep.subr.mxu0 0.0
    %1047 = vmatpush1.msra.mxu0 0.0
    %1048 = vmatprep.subr.mxu0 0.0
    %1049 = vmatpush1.msra.mxu0 0.0
    %1050 = vmatprep.subr.mxu0 0.0
    %1051 = vmatpush1.msra.mxu0 0.0
    %1052 = vmatprep.subr.mxu0 0.0
    %1053 = vmatpush1.msra.mxu0 0.0
    %1054 = vmatprep.subr.mxu0 0.0
    %1055 = vmatpush1.msra.mxu0 0.0
    %1056 = vmatprep.subr.mxu0 0.0
    %1057 = vmatpush1.msra.mxu0 0.0
    %1058 = vmatprep.subr.mxu0 0.0
    %1059 = vmatpush1.msra.mxu0 0.0
    %1060 = vmatprep.subr.mxu0 0.0
    %1061 = vmatpush1.msra.mxu0 0.0
    %1062 = vmatprep.subr.mxu0 0.0
    %1063 = vmatpush1.msra.mxu0 0.0
    %1064 = vmatprep.subr.mxu0 0.0
    %1065 = vmatpush1.msra.mxu0 0.0
    %1066 = vmatprep.subr.mxu0 0.0
    %1067 = vmatpush1.msra.mxu0 0.0
    %1068 = vmatprep.mubr.f32.mxu0 0.0
    %1069 = vmatmul.mubr.f32.gmra.mrb[0].mxu0 %v931
    %v1070 = vpop.f32.mrb[0].mxu0
    %v1071 = vadd.f32 0.0, %v1070
    %v1072 = vpop.f32.mrb[0].mxu0
    %v1073 = vadd.f32 0.0, %v1072
    %1074 = vdwg.mxu0
    %v1075 = vadd.f32 %v775, %v1000
    %v1076 = vadd.f32 %v777, %v1002
    %v1077 = vadd.f32 %v846, %v1071
    %v1078 = vadd.f32 %v848, %v1073
    %v1079 = vxor.u32 %v1075, 2147483648
    %v1080 = vxor.u32 %v1076, 2147483648
    %v1081 = vxor.u32 %v1077, 2147483648
    %v1082 = vmul.f32 %v1079, 1.442695
    %v1083 = vpow.pop %v1082
    %v1084 = vmul.f32 %v1080, 1.442695
    %v1085 = vpow.pop %v1084
    %v1086 = vmul.f32 %v1081, 1.442695
    %v1087 = vpow.pop %v1086
    %v1088 = vadd.f32 %v1083, 1.0
    %v1089 = vadd.f32 %v1085, 1.0
    %v1090 = vadd.f32 %v1087, 1.0
    %v1091 = vrcp.pop %v1088
    %v1092 = vmul.f32 1.0, %v1091
    %v1093 = vrcp.pop %v1089
    %v1094 = vmul.f32 1.0, %v1093
    %v1095 = vrcp.pop %v1090
    %v1096 = vmul.f32 1.0, %v1095
    %v1097 = vtanh.pop %v1078
    %v1098 = vmul.f32 %v1094, %v932
    %v1099 = vmul.f32 %v1092, %v1097
    %v1100 = vadd.f32 %v1098, %v1099
    %v1101 = vtanh.pop %v1100
    %v1102 = vmul.f32 %v1096, %v1101
    %1103 = vmatprep.subr.mxu0 0.0
    %1104 = vmatpush1.msra.mxu0 %v914
    %1105 = vmatprep.subr.mxu0 0.0
    %1106 = vmatpush1.msra.mxu0 %v915
    %1107 = vmatprep.subr.mxu0 0.0
    %1108 = vmatpush1.msra.mxu0 %v916
    %1109 = vmatprep.subr.mxu0 0.0
    %1110 = vmatpush1.msra.mxu0 %v917
    %1111 = vmatprep.subr.mxu0 0.0
    %1112 = vmatpush1.msra.mxu0 %v918
    %1113 = vmatprep.subr.mxu0 0.0
    %1114 = vmatpush1.msra.mxu0 %v919
    %1115 = vmatprep.subr.mxu0 0.0
    %1116 = vmatpush1.msra.mxu0 %v920
    %1117 = vmatprep.subr.mxu0 0.0
    %1118 = vmatpush1.msra.mxu0 %v921
    %1119 = vmatprep.subr.mxu0 0.0
    %1120 = vmatpush1.msra.mxu0 %v922
    %1121 = vmatprep.subr.mxu0 0.0
    %1122 = vmatpush1.msra.mxu0 %v923
    %1123 = vmatprep.subr.mxu0 0.0
    %1124 = vmatpush1.msra.mxu0 %v924
    %1125 = vmatprep.subr.mxu0 0.0
    %1126 = vmatpush1.msra.mxu0 %v925
    %1127 = vmatprep.subr.mxu0 0.0
    %1128 = vmatpush1.msra.mxu0 %v926
    %1129 = vmatprep.subr.mxu0 0.0
    %1130 = vmatpush1.msra.mxu0 %v927
    %1131 = vmatprep.subr.mxu0 0.0
    %1132 = vmatpush1.msra.mxu0 %v928
    %1133 = vmatprep.subr.mxu0 0.0
    %1134 = vmatpush1.msra.mxu0 %v929
    %1135 = vmatprep.subr.mxu0 0.0
    %1136 = vmatpush1.msra.mxu0 0.0
    %1137 = vmatprep.subr.mxu0 0.0
    %1138 = vmatpush1.msra.mxu0 0.0
    %1139 = vmatprep.subr.mxu0 0.0
    %1140 = vmatpush1.msra.mxu0 0.0
    %1141 = vmatprep.subr.mxu0 0.0
    %1142 = vmatpush1.msra.mxu0 0.0
    %1143 = vmatprep.subr.mxu0 0.0
    %1144 = vmatpush1.msra.mxu0 0.0
    %1145 = vmatprep.subr.mxu0 0.0
    %1146 = vmatpush1.msra.mxu0 0.0
    %1147 = vmatprep.subr.mxu0 0.0
    %1148 = vmatpush1.msra.mxu0 0.0
    %1149 = vmatprep.subr.mxu0 0.0
    %1150 = vmatpush1.msra.mxu0 0.0
    %1151 = vmatprep.subr.mxu0 0.0
    %1152 = vmatpush1.msra.mxu0 0.0
    %1153 = vmatprep.subr.mxu0 0.0
    %1154 = vmatpush1.msra.mxu0 0.0
    %1155 = vmatprep.subr.mxu0 0.0
    %1156 = vmatpush1.msra.mxu0 0.0
    %1157 = vmatprep.subr.mxu0 0.0
    %1158 = vmatpush1.msra.mxu0 0.0
    %1159 = vmatprep.subr.mxu0 0.0
    %1160 = vmatpush1.msra.mxu0 0.0
    %1161 = vmatprep.subr.mxu0 0.0
    %1162 = vmatpush1.msra.mxu0 0.0
    %1163 = vmatprep.subr.mxu0 0.0
    %1164 = vmatpush1.msra.mxu0 0.0
    %1165 = vmatprep.subr.mxu0 0.0
    %1166 = vmatpush1.msra.mxu0 0.0
    %1167 = vmatprep.mubr.f32.mxu0 0.0
    %1168 = vmatmul.mubr.f32.gmra.mrb[0].mxu0 %v1102
    %v1169 = vpop.f32.mrb[0].mxu0
    %v1170 = vadd.f32 %v930, %v1169
    %v1171 = vpop.f32.mrb[0].mxu0
    %1172 = vdwg.mxu0
    %1173 = vst [vmem:[#allocation2] sm:$0x1] %v1170
    %1174 = vmatprep.subr.mxu0 %v851
    %1175 = vmatpush1.msra.mxu0 %v850
    %1176 = vmatprep.subr.mxu0 %v855
    %1177 = vmatpush1.msra.mxu0 %v854
    %1178 = vmatprep.subr.mxu0 %v859
    %1179 = vmatpush1.msra.mxu0 %v858
    %1180 = vmatprep.subr.mxu0 %v863
    %1181 = vmatpush1.msra.mxu0 %v862
    %1182 = vmatprep.subr.mxu0 %v867
    %1183 = vmatpush1.msra.mxu0 %v866
    %1184 = vmatprep.subr.mxu0 %v871
    %1185 = vmatpush1.msra.mxu0 %v870
    %1186 = vmatprep.subr.mxu0 %v875
    %1187 = vmatpush1.msra.mxu0 %v874
    %1188 = vmatprep.subr.mxu0 %v879
    %1189 = vmatpush1.msra.mxu0 %v878
    %1190 = vmatprep.subr.mxu0 %v883
    %1191 = vmatpush1.msra.mxu0 %v882
    %1192 = vmatprep.subr.mxu0 %v887
    %1193 = vmatpush1.msra.mxu0 %v886
    %1194 = vmatprep.subr.mxu0 %v891
    %1195 = vmatpush1.msra.mxu0 %v890
    %1196 = vmatprep.subr.mxu0 %v895
    %1197 = vmatpush1.msra.mxu0 %v894
    %1198 = vmatprep.subr.mxu0 %v899
    %1199 = vmatpush1.msra.mxu0 %v898
    %1200 = vmatprep.subr.mxu0 %v903
    %1201 = vmatpush1.msra.mxu0 %v902
    %1202 = vmatprep.subr.mxu0 %v907
    %1203 = vmatpush1.msra.mxu0 %v906
    %1204 = vmatprep.subr.mxu0 %v911
    %1205 = vmatpush1.msra.mxu0 %v910
    %1206 = vmatprep.subr.mxu0 0.0
    %1207 = vmatpush1.msra.mxu0 0.0
    %1208 = vmatprep.subr.mxu0 0.0
    %1209 = vmatpush1.msra.mxu0 0.0
    %1210 = vmatprep.subr.mxu0 0.0
    %1211 = vmatpush1.msra.mxu0 0.0
    %1212 = vmatprep.subr.mxu0 0.0
    %1213 = vmatpush1.msra.mxu0 0.0
    %1214 = vmatprep.subr.mxu0 0.0
    %1215 = vmatpush1.msra.mxu0 0.0
    %1216 = vmatprep.subr.mxu0 0.0
    %1217 = vmatpush1.msra.mxu0 0.0
    %1218 = vmatprep.subr.mxu0 0.0
    %1219 = vmatpush1.msra.mxu0 0.0
    %1220 = vmatprep.subr.mxu0 0.0
    %1221 = vmatpush1.msra.mxu0 0.0
    %1222 = vmatprep.subr.mxu0 0.0
    %1223 = vmatpush1.msra.mxu0 0.0
    %1224 = vmatprep.subr.mxu0 0.0
    %1225 = vmatpush1.msra.mxu0 0.0
    %1226 = vmatprep.subr.mxu0 0.0
    %1227 = vmatpush1.msra.mxu0 0.0
    %1228 = vmatprep.subr.mxu0 0.0
    %1229 = vmatpush1.msra.mxu0 0.0
    %1230 = vmatprep.subr.mxu0 0.0
    %1231 = vmatpush1.msra.mxu0 0.0
    %1232 = vmatprep.subr.mxu0 0.0
    %1233 = vmatpush1.msra.mxu0 0.0
    %1234 = vmatprep.subr.mxu0 0.0
    %1235 = vmatpush1.msra.mxu0 0.0
    %1236 = vmatprep.subr.mxu0 0.0
    %1237 = vmatpush1.msra.mxu0 0.0
    %1238 = vmatprep.mubr.f32.mxu0 0.0
    %1239 = vmatmul.mubr.f32.gmra.mrb[0].mxu0 %v1102
    %v1240 = vpop.f32.mrb[0].mxu0
    %v1241 = vadd.f32 0.0, %v1240
    %v1242 = vpop.f32.mrb[0].mxu0
    %v1243 = vadd.f32 0.0, %v1242
    %1244 = vdwg.mxu0
    %1245 = vmatprep.subr.mxu0 %v853
    %1246 = vmatpush1.msra.mxu0 %v852
    %1247 = vmatprep.subr.mxu0 %v857
    %1248 = vmatpush1.msra.mxu0 %v856
    %1249 = vmatprep.subr.mxu0 %v861
    %1250 = vmatpush1.msra.mxu0 %v860
    %1251 = vmatprep.subr.mxu0 %v865
    %1252 = vmatpush1.msra.mxu0 %v864
    %1253 = vmatprep.subr.mxu0 %v869
    %1254 = vmatpush1.msra.mxu0 %v868
    %1255 = vmatprep.subr.mxu0 %v873
    %1256 = vmatpush1.msra.mxu0 %v872
    %1257 = vmatprep.subr.mxu0 %v877
    %1258 = vmatpush1.msra.mxu0 %v876
    %1259 = vmatprep.subr.mxu0 %v881
    %1260 = vmatpush1.msra.mxu0 %v880
    %1261 = vmatprep.subr.mxu0 %v885
    %1262 = vmatpush1.msra.mxu0 %v884
    %1263 = vmatprep.subr.mxu0 %v889
    %1264 = vmatpush1.msra.mxu0 %v888
    %1265 = vmatprep.subr.mxu0 %v893
    %1266 = vmatpush1.msra.mxu0 %v892
    %1267 = vmatprep.subr.mxu0 %v897
    %1268 = vmatpush1.msra.mxu0 %v896
    %1269 = vmatprep.subr.mxu0 %v901
    %1270 = vmatpush1.msra.mxu0 %v900
    %1271 = vmatprep.subr.mxu0 %v905
    %1272 = vmatpush1.msra.mxu0 %v904
    %1273 = vmatprep.subr.mxu0 %v909
    %1274 = vmatpush1.msra.mxu0 %v908
    %1275 = vmatprep.subr.mxu0 %v913
    %1276 = vmatpush1.msra.mxu0 %v912
    %1277 = vmatprep.subr.mxu0 0.0
    %1278 = vmatpush1.msra.mxu0 0.0
    %1279 = vmatprep.subr.mxu0 0.0
    %1280 = vmatpush1.msra.mxu0 0.0
    %1281 = vmatprep.subr.mxu0 0.0
    %1282 = vmatpush1.msra.mxu0 0.0
    %1283 = vmatprep.subr.mxu0 0.0
    %1284 = vmatpush1.msra.mxu0 0.0
    %1285 = vmatprep.subr.mxu0 0.0
    %1286 = vmatpush1.msra.mxu0 0.0
    %1287 = vmatprep.subr.mxu0 0.0
    %1288 = vmatpush1.msra.mxu0 0.0
    %1289 = vmatprep.subr.mxu0 0.0
    %1290 = vmatpush1.msra.mxu0 0.0
    %1291 = vmatprep.subr.mxu0 0.0
    %1292 = vmatpush1.msra.mxu0 0.0
    %1293 = vmatprep.subr.mxu0 0.0
    %1294 = vmatpush1.msra.mxu0 0.0
    %1295 = vmatprep.subr.mxu0 0.0
    %1296 = vmatpush1.msra.mxu0 0.0
    %1297 = vmatprep.subr.mxu0 0.0
    %1298 = vmatpush1.msra.mxu0 0.0
    %1299 = vmatprep.subr.mxu0 0.0
    %1300 = vmatpush1.msra.mxu0 0.0
    %1301 = vmatprep.subr.mxu0 0.0
    %1302 = vmatpush1.msra.mxu0 0.0
    %1303 = vmatprep.subr.mxu0 0.0
    %1304 = vmatpush1.msra.mxu0 0.0
    %1305 = vmatprep.subr.mxu0 0.0
    %1306 = vmatpush1.msra.mxu0 0.0
    %1307 = vmatprep.subr.mxu0 0.0
    %1308 = vmatpush1.msra.mxu0 0.0
    %1309 = vmatprep.mubr.f32.mxu0 0.0
    %1310 = vmatmul.mubr.f32.gmra.mrb[0].mxu0 %v1102
    %v1311 = vpop.f32.mrb[0].mxu0
    %v1312 = vadd.f32 0.0, %v1311
    %v1313 = vpop.f32.mrb[0].mxu0
    %v1314 = vadd.f32 0.0, %v1313
    %1315 = vdwg.mxu0
    %v1320 = vrot.slane %v1241, 7
    %v1321 = vrot.slane %v1243, 7
    %v1322 = vrot.slane %v1312, 7
    %v1323 = vrot.slane %v1314, 7
    %v1328 = vadd.f32 %v775, %v1320
    %v1329 = vadd.f32 %v777, %v1321
    %v1330 = vadd.f32 %v846, %v1322
    %v1331 = vadd.f32 %v848, %v1323
    %v1332 = vxor.u32 %v1328, 2147483648
    %v1333 = vxor.u32 %v1329, 2147483648
    %v1334 = vxor.u32 %v1330, 2147483648
    %v1335 = vmul.f32 %v1332, 1.442695
    %v1336 = vpow.pop %v1335
    %v1337 = vmul.f32 %v1333, 1.442695
    %v1338 = vpow.pop %v1337
    %v1339 = vmul.f32 %v1334, 1.442695
    %v1340 = vpow.pop %v1339
    %v1341 = vadd.f32 %v1336, 1.0
    %v1342 = vadd.f32 %v1338, 1.0
    %v1343 = vadd.f32 %v1340, 1.0
    %v1344 = vrcp.pop %v1341
    %v1345 = vmul.f32 1.0, %v1344
    %v1346 = vrcp.pop %v1342
    %v1347 = vmul.f32 1.0, %v1346
    %v1348 = vrcp.pop %v1343
    %v1349 = vmul.f32 1.0, %v1348
    %v1350 = vtanh.pop %v1331
    %v1352 = vrot.slane %v1100, 7
    %v1354 = vmul.f32 %v1347, %v1352
    %v1355 = vmul.f32 %v1345, %v1350
    %v1356 = vadd.f32 %v1354, %v1355
    %v1357 = vtanh.pop %v1356
    %v1358 = vmul.f32 %v1349, %v1357
    %v1360 = vrot.slane %v1358, 1
    %1362 = vmatprep.subr.mxu0 0.0
    %1363 = vmatpush1.msra.mxu0 %v914
    %1364 = vmatprep.subr.mxu0 0.0
    %1365 = vmatpush1.msra.mxu0 %v915
    %1366 = vmatprep.subr.mxu0 0.0
    %1367 = vmatpush1.msra.mxu0 %v916
    %1368 = vmatprep.subr.mxu0 0.0
    %1369 = vmatpush1.msra.mxu0 %v917
    %1370 = vmatprep.subr.mxu0 0.0
    %1371 = vmatpush1.msra.mxu0 %v918
    %1372 = vmatprep.subr.mxu0 0.0
    %1373 = vmatpush1.msra.mxu0 %v919
    %1374 = vmatprep.subr.mxu0 0.0
    %1375 = vmatpush1.msra.mxu0 %v920
    %1376 = vmatprep.subr.mxu0 0.0
    %1377 = vmatpush1.msra.mxu0 %v921
    %1378 = vmatprep.subr.mxu0 0.0
    %1379 = vmatpush1.msra.mxu0 %v922
    %1380 = vmatprep.subr.mxu0 0.0
    %1381 = vmatpush1.msra.mxu0 %v923
    %1382 = vmatprep.subr.mxu0 0.0
    %1383 = vmatpush1.msra.mxu0 %v924
    %1384 = vmatprep.subr.mxu0 0.0
    %1385 = vmatpush1.msra.mxu0 %v925
    %1386 = vmatprep.subr.mxu0 0.0
    %1387 = vmatpush1.msra.mxu0 %v926
    %1388 = vmatprep.subr.mxu0 0.0
    %1389 = vmatpush1.msra.mxu0 %v927
    %1390 = vmatprep.subr.mxu0 0.0
    %1391 = vmatpush1.msra.mxu0 %v928
    %1392 = vmatprep.subr.mxu0 0.0
    %1393 = vmatpush1.msra.mxu0 %v929
    %1394 = vmatprep.subr.mxu0 0.0
    %1395 = vmatpush1.msra.mxu0 0.0
    %1396 = vmatprep.subr.mxu0 0.0
    %1397 = vmatpush1.msra.mxu0 0.0
    %1398 = vmatprep.subr.mxu0 0.0
    %1399 = vmatpush1.msra.mxu0 0.0
    %1400 = vmatprep.subr.mxu0 0.0
    %1401 = vmatpush1.msra.mxu0 0.0
    %1402 = vmatprep.subr.mxu0 0.0
    %1403 = vmatpush1.msra.mxu0 0.0
    %1404 = vmatprep.subr.mxu0 0.0
    %1405 = vmatpush1.msra.mxu0 0.0
    %1406 = vmatprep.subr.mxu0 0.0
    %1407 = vmatpush1.msra.mxu0 0.0
    %1408 = vmatprep.subr.mxu0 0.0
    %1409 = vmatpush1.msra.mxu0 0.0
    %1410 = vmatprep.subr.mxu0 0.0
    %1411 = vmatpush1.msra.mxu0 0.0
    %1412 = vmatprep.subr.mxu0 0.0
    %1413 = vmatpush1.msra.mxu0 0.0
    %1414 = vmatprep.subr.mxu0 0.0
    %1415 = vmatpush1.msra.mxu0 0.0
    %1416 = vmatprep.subr.mxu0 0.0
    %1417 = vmatpush1.msra.mxu0 0.0
    %1418 = vmatprep.subr.mxu0 0.0
    %1419 = vmatpush1.msra.mxu0 0.0
    %1420 = vmatprep.subr.mxu0 0.0
    %1421 = vmatpush1.msra.mxu0 0.0
    %1422 = vmatprep.subr.mxu0 0.0
    %1423 = vmatpush1.msra.mxu0 0.0
    %1424 = vmatprep.subr.mxu0 0.0
    %1425 = vmatpush1.msra.mxu0 0.0
    %1426 = vmatprep.mubr.f32.mxu0 0.0
    %1427 = vmatmul.mubr.f32.gmra.mrb[0].mxu0 %v1360
    %v1428 = vpop.f32.mrb[0].mxu0
    %v1429 = vadd.f32 %v930, %v1428
    %v1430 = vpop.f32.mrb[0].mxu0
    %1431 = vdwg.mxu0
    %1432 = vst [vmem:[#allocation2 + $0x1] sm:$0x1] %v1429
    %1433 = vmatprep.subr.mxu0 %v851
    %1434 = vmatpush1.msra.mxu0 %v850
    %1435 = vmatprep.subr.mxu0 %v855
    %1436 = vmatpush1.msra.mxu0 %v854
    %1437 = vmatprep.subr.mxu0 %v859
    %1438 = vmatpush1.msra.mxu0 %v858
    %1439 = vmatprep.subr.mxu0 %v863
    %1440 = vmatpush1.msra.mxu0 %v862
    %1441 = vmatprep.subr.mxu0 %v867
    %1442 = vmatpush1.msra.mxu0 %v866
    %1443 = vmatprep.subr.mxu0 %v871
    %1444 = vmatpush1.msra.mxu0 %v870
    %1445 = vmatprep.subr.mxu0 %v875
    %1446 = vmatpush1.msra.mxu0 %v874
    %1447 = vmatprep.subr.mxu0 %v879
    %1448 = vmatpush1.msra.mxu0 %v878
    %1449 = vmatprep.subr.mxu0 %v883
    %1450 = vmatpush1.msra.mxu0 %v882
    %1451 = vmatprep.subr.mxu0 %v887
    %1452 = vmatpush1.msra.mxu0 %v886
    %1453 = vmatprep.subr.mxu0 %v891
    %1454 = vmatpush1.msra.mxu0 %v890
    %1455 = vmatprep.subr.mxu0 %v895
    %1456 = vmatpush1.msra.mxu0 %v894
    %1457 = vmatprep.subr.mxu0 %v899
    %1458 = vmatpush1.msra.mxu0 %v898
    %1459 = vmatprep.subr.mxu0 %v903
    %1460 = vmatpush1.msra.mxu0 %v902
    %1461 = vmatprep.subr.mxu0 %v907
    %1462 = vmatpush1.msra.mxu0 %v906
    %1463 = vmatprep.subr.mxu0 %v911
    %1464 = vmatpush1.msra.mxu0 %v910
    %1465 = vmatprep.subr.mxu0 0.0
    %1466 = vmatpush1.msra.mxu0 0.0
    %1467 = vmatprep.subr.mxu0 0.0
    %1468 = vmatpush1.msra.mxu0 0.0
    %1469 = vmatprep.subr.mxu0 0.0
    %1470 = vmatpush1.msra.mxu0 0.0
    %1471 = vmatprep.subr.mxu0 0.0
    %1472 = vmatpush1.msra.mxu0 0.0
    %1473 = vmatprep.subr.mxu0 0.0
    %1474 = vmatpush1.msra.mxu0 0.0
    %1475 = vmatprep.subr.mxu0 0.0
    %1476 = vmatpush1.msra.mxu0 0.0
    %1477 = vmatprep.subr.mxu0 0.0
    %1478 = vmatpush1.msra.mxu0 0.0
    %1479 = vmatprep.subr.mxu0 0.0
    %1480 = vmatpush1.msra.mxu0 0.0
    %1481 = vmatprep.subr.mxu0 0.0
    %1482 = vmatpush1.msra.mxu0 0.0
    %1483 = vmatprep.subr.mxu0 0.0
    %1484 = vmatpush1.msra.mxu0 0.0
    %1485 = vmatprep.subr.mxu0 0.0
    %1486 = vmatpush1.msra.mxu0 0.0
    %1487 = vmatprep.subr.mxu0 0.0
    %1488 = vmatpush1.msra.mxu0 0.0
    %1489 = vmatprep.subr.mxu0 0.0
    %1490 = vmatpush1.msra.mxu0 0.0
    %1491 = vmatprep.subr.mxu0 0.0
    %1492 = vmatpush1.msra.mxu0 0.0
    %1493 = vmatprep.subr.mxu0 0.0
    %1494 = vmatpush1.msra.mxu0 0.0
    %1495 = vmatprep.subr.mxu0 0.0
    %1496 = vmatpush1.msra.mxu0 0.0
    %1497 = vmatprep.mubr.f32.mxu0 0.0
    %1498 = vmatmul.mubr.f32.gmra.mrb[0].mxu0 %v1360
    %v1499 = vpop.f32.mrb[0].mxu0
    %v1500 = vadd.f32 0.0, %v1499
    %v1501 = vpop.f32.mrb[0].mxu0
    %v1502 = vadd.f32 0.0, %v1501
    %1503 = vdwg.mxu0
    %1504 = vmatprep.subr.mxu0 %v853
    %1505 = vmatpush1.msra.mxu0 %v852
    %1506 = vmatprep.subr.mxu0 %v857
    %1507 = vmatpush1.msra.mxu0 %v856
    %1508 = vmatprep.subr.mxu0 %v861
    %1509 = vmatpush1.msra.mxu0 %v860
    %1510 = vmatprep.subr.mxu0 %v865
    %1511 = vmatpush1.msra.mxu0 %v864
    %1512 = vmatprep.subr.mxu0 %v869
    %1513 = vmatpush1.msra.mxu0 %v868
    %1514 = vmatprep.subr.mxu0 %v873
    %1515 = vmatpush1.msra.mxu0 %v872
    %1516 = vmatprep.subr.mxu0 %v877
    %1517 = vmatpush1.msra.mxu0 %v876
    %1518 = vmatprep.subr.mxu0 %v881
    %1519 = vmatpush1.msra.mxu0 %v880
    %1520 = vmatprep.subr.mxu0 %v885
    %1521 = vmatpush1.msra.mxu0 %v884
    %1522 = vmatprep.subr.mxu0 %v889
    %1523 = vmatpush1.msra.mxu0 %v888
    %1524 = vmatprep.subr.mxu0 %v893
    %1525 = vmatpush1.msra.mxu0 %v892
    %1526 = vmatprep.subr.mxu0 %v897
    %1527 = vmatpush1.msra.mxu0 %v896
    %1528 = vmatprep.subr.mxu0 %v901
    %1529 = vmatpush1.msra.mxu0 %v900
    %1530 = vmatprep.subr.mxu0 %v905
    %1531 = vmatpush1.msra.mxu0 %v904
    %1532 = vmatprep.subr.mxu0 %v909
    %1533 = vmatpush1.msra.mxu0 %v908
    %1534 = vmatprep.subr.mxu0 %v913
    %1535 = vmatpush1.msra.mxu0 %v912
    %1536 = vmatprep.subr.mxu0 0.0
    %1537 = vmatpush1.msra.mxu0 0.0
    %1538 = vmatprep.subr.mxu0 0.0
    %1539 = vmatpush1.msra.mxu0 0.0
    %1540 = vmatprep.subr.mxu0 0.0
    %1541 = vmatpush1.msra.mxu0 0.0
    %1542 = vmatprep.subr.mxu0 0.0
    %1543 = vmatpush1.msra.mxu0 0.0
    %1544 = vmatprep.subr.mxu0 0.0
    %1545 = vmatpush1.msra.mxu0 0.0
    %1546 = vmatprep.subr.mxu0 0.0
    %1547 = vmatpush1.msra.mxu0 0.0
    %1548 = vmatprep.subr.mxu0 0.0
    %1549 = vmatpush1.msra.mxu0 0.0
    %1550 = vmatprep.subr.mxu0 0.0
    %1551 = vmatpush1.msra.mxu0 0.0
    %1552 = vmatprep.subr.mxu0 0.0
    %1553 = vmatpush1.msra.mxu0 0.0
    %1554 = vmatprep.subr.mxu0 0.0
    %1555 = vmatpush1.msra.mxu0 0.0
    %1556 = vmatprep.subr.mxu0 0.0
    %1557 = vmatpush1.msra.mxu0 0.0
    %1558 = vmatprep.subr.mxu0 0.0
    %1559 = vmatpush1.msra.mxu0 0.0
    %1560 = vmatprep.subr.mxu0 0.0
    %1561 = vmatpush1.msra.mxu0 0.0
    %1562 = vmatprep.subr.mxu0 0.0
    %1563 = vmatpush1.msra.mxu0 0.0
    %1564 = vmatprep.subr.mxu0 0.0
    %1565 = vmatpush1.msra.mxu0 0.0
    %1566 = vmatprep.subr.mxu0 0.0
    %1567 = vmatpush1.msra.mxu0 0.0
    %1568 = vmatprep.mubr.f32.mxu0 0.0
    %1569 = vmatmul.mubr.f32.gmra.mrb[0].mxu0 %v1360
    %v1570 = vpop.f32.mrb[0].mxu0
    %v1571 = vadd.f32 0.0, %v1570
    %v1572 = vpop.f32.mrb[0].mxu0
    %v1573 = vadd.f32 0.0, %v1572
    %1574 = vdwg.mxu0
    %v1579 = vrot.slane %v1500, 6
    %v1580 = vrot.slane %v1502, 6
    %v1581 = vrot.slane %v1571, 6
    %v1582 = vrot.slane %v1573, 6
    %v1587 = vadd.f32 %v775, %v1579
    %v1588 = vadd.f32 %v777, %v1580
    %v1589 = vadd.f32 %v846, %v1581
    %v1590 = vadd.f32 %v848, %v1582
    %v1591 = vxor.u32 %v1587, 2147483648
    %v1592 = vxor.u32 %v1588, 2147483648
    %v1593 = vxor.u32 %v1589, 2147483648
    %v1594 = vmul.f32 %v1591, 1.442695
    %v1595 = vpow.pop %v1594
    %v1596 = vmul.f32 %v1592, 1.442695
    %v1597 = vpow.pop %v1596
    %v1598 = vmul.f32 %v1593, 1.442695
    %v1599 = vpow.pop %v1598
    %v1600 = vadd.f32 %v1595, 1.0
    %v1601 = vadd.f32 %v1597, 1.0
    %v1602 = vadd.f32 %v1599, 1.0
    %v1603 = vrcp.pop %v1600
    %v1604 = vmul.f32 1.0, %v1603
    %v1605 = vrcp.pop %v1601
    %v1606 = vmul.f32 1.0, %v1605
    %v1607 = vrcp.pop %v1602
    %v1608 = vmul.f32 1.0, %v1607
    %v1609 = vtanh.pop %v1590
    %v1611 = vrot.slane %v1356, 7
    %v1613 = vmul.f32 %v1606, %v1611
    %v1614 = vmul.f32 %v1604, %v1609
    %v1615 = vadd.f32 %v1613, %v1614
    %v1616 = vtanh.pop %v1615
    %v1617 = vmul.f32 %v1608, %v1616
    %v1619 = vrot.slane %v1617, 2
    %1621 = vmatprep.subr.mxu0 0.0
    %1622 = vmatpush1.msra.mxu0 %v914
    %1623 = vmatprep.subr.mxu0 0.0
    %1624 = vmatpush1.msra.mxu0 %v915
    %1625 = vmatprep.subr.mxu0 0.0
    %1626 = vmatpush1.msra.mxu0 %v916
    %1627 = vmatprep.subr.mxu0 0.0
    %1628 = vmatpush1.msra.mxu0 %v917
    %1629 = vmatprep.subr.mxu0 0.0
    %1630 = vmatpush1.msra.mxu0 %v918
    %1631 = vmatprep.subr.mxu0 0.0
    %1632 = vmatpush1.msra.mxu0 %v919
    %1633 = vmatprep.subr.mxu0 0.0
    %1634 = vmatpush1.msra.mxu0 %v920
    %1635 = vmatprep.subr.mxu0 0.0
    %1636 = vmatpush1.msra.mxu0 %v921
    %1637 = vmatprep.subr.mxu0 0.0
    %1638 = vmatpush1.msra.mxu0 %v922
    %1639 = vmatprep.subr.mxu0 0.0
    %1640 = vmatpush1.msra.mxu0 %v923
    %1641 = vmatprep.subr.mxu0 0.0
    %1642 = vmatpush1.msra.mxu0 %v924
    %1643 = vmatprep.subr.mxu0 0.0
    %1644 = vmatpush1.msra.mxu0 %v925
    %1645 = vmatprep.subr.mxu0 0.0
    %1646 = vmatpush1.msra.mxu0 %v926
    %1647 = vmatprep.subr.mxu0 0.0
    %1648 = vmatpush1.msra.mxu0 %v927
    %1649 = vmatprep.subr.mxu0 0.0
    %1650 = vmatpush1.msra.mxu0 %v928
    %1651 = vmatprep.subr.mxu0 0.0
    %1652 = vmatpush1.msra.mxu0 %v929
    %1653 = vmatprep.subr.mxu0 0.0
    %1654 = vmatpush1.msra.mxu0 0.0
    %1655 = vmatprep.subr.mxu0 0.0
    %1656 = vmatpush1.msra.mxu0 0.0
    %1657 = vmatprep.subr.mxu0 0.0
    %1658 = vmatpush1.msra.mxu0 0.0
    %1659 = vmatprep.subr.mxu0 0.0
    %1660 = vmatpush1.msra.mxu0 0.0
    %1661 = vmatprep.subr.mxu0 0.0
    %1662 = vmatpush1.msra.mxu0 0.0
    %1663 = vmatprep.subr.mxu0 0.0
    %1664 = vmatpush1.msra.mxu0 0.0
    %1665 = vmatprep.subr.mxu0 0.0
    %1666 = vmatpush1.msra.mxu0 0.0
    %1667 = vmatprep.subr.mxu0 0.0
    %1668 = vmatpush1.msra.mxu0 0.0
    %1669 = vmatprep.subr.mxu0 0.0
    %1670 = vmatpush1.msra.mxu0 0.0
    %1671 = vmatprep.subr.mxu0 0.0
    %1672 = vmatpush1.msra.mxu0 0.0
    %1673 = vmatprep.subr.mxu0 0.0
    %1674 = vmatpush1.msra.mxu0 0.0
    %1675 = vmatprep.subr.mxu0 0.0
    %1676 = vmatpush1.msra.mxu0 0.0
    %1677 = vmatprep.subr.mxu0 0.0
    %1678 = vmatpush1.msra.mxu0 0.0
    %1679 = vmatprep.subr.mxu0 0.0
    %1680 = vmatpush1.msra.mxu0 0.0
    %1681 = vmatprep.subr.mxu0 0.0
    %1682 = vmatpush1.msra.mxu0 0.0
    %1683 = vmatprep.subr.mxu0 0.0
    %1684 = vmatpush1.msra.mxu0 0.0
    %1685 = vmatprep.mubr.f32.mxu0 0.0
    %1686 = vmatmul.mubr.f32.gmra.mrb[0].mxu0 %v1619
    %v1687 = vpop.f32.mrb[0].mxu0
    %v1688 = vadd.f32 %v930, %v1687
    %v1689 = vpop.f32.mrb[0].mxu0
    %1690 = vdwg.mxu0
    %1691 = vst [vmem:[#allocation2 + $0x2] sm:$0x1] %v1688
    %1692 = vmatprep.subr.mxu0 %v851
    %1693 = vmatpush1.msra.mxu0 %v850
    %1694 = vmatprep.subr.mxu0 %v855
    %1695 = vmatpush1.msra.mxu0 %v854
    %1696 = vmatprep.subr.mxu0 %v859
    %1697 = vmatpush1.msra.mxu0 %v858
    %1698 = vmatprep.subr.mxu0 %v863
    %1699 = vmatpush1.msra.mxu0 %v862
    %1700 = vmatprep.subr.mxu0 %v867
    %1701 = vmatpush1.msra.mxu0 %v866
    %1702 = vmatprep.subr.mxu0 %v871
    %1703 = vmatpush1.msra.mxu0 %v870
    %1704 = vmatprep.subr.mxu0 %v875
    %1705 = vmatpush1.msra.mxu0 %v874
    %1706 = vmatprep.subr.mxu0 %v879
    %1707 = vmatpush1.msra.mxu0 %v878
    %1708 = vmatprep.subr.mxu0 %v883
    %1709 = vmatpush1.msra.mxu0 %v882
    %1710 = vmatprep.subr.mxu0 %v887
    %1711 = vmatpush1.msra.mxu0 %v886
    %1712 = vmatprep.subr.mxu0 %v891
    %1713 = vmatpush1.msra.mxu0 %v890
    %1714 = vmatprep.subr.mxu0 %v895
    %1715 = vmatpush1.msra.mxu0 %v894
    %1716 = vmatprep.subr.mxu0 %v899
    %1717 = vmatpush1.msra.mxu0 %v898
    %1718 = vmatprep.subr.mxu0 %v903
    %1719 = vmatpush1.msra.mxu0 %v902
    %1720 = vmatprep.subr.mxu0 %v907
    %1721 = vmatpush1.msra.mxu0 %v906
    %1722 = vmatprep.subr.mxu0 %v911
    %1723 = vmatpush1.msra.mxu0 %v910
    %1724 = vmatprep.subr.mxu0 0.0
    %1725 = vmatpush1.msra.mxu0 0.0
    %1726 = vmatprep.subr.mxu0 0.0
    %1727 = vmatpush1.msra.mxu0 0.0
    %1728 = vmatprep.subr.mxu0 0.0
    %1729 = vmatpush1.msra.mxu0 0.0
    %1730 = vmatprep.subr.mxu0 0.0
    %1731 = vmatpush1.msra.mxu0 0.0
    %1732 = vmatprep.subr.mxu0 0.0
    %1733 = vmatpush1.msra.mxu0 0.0
    %1734 = vmatprep.subr.mxu0 0.0
    %1735 = vmatpush1.msra.mxu0 0.0
    %1736 = vmatprep.subr.mxu0 0.0
    %1737 = vmatpush1.msra.mxu0 0.0
    %1738 = vmatprep.subr.mxu0 0.0
    %1739 = vmatpush1.msra.mxu0 0.0
    %1740 = vmatprep.subr.mxu0 0.0
    %1741 = vmatpush1.msra.mxu0 0.0
    %1742 = vmatprep.subr.mxu0 0.0
    %1743 = vmatpush1.msra.mxu0 0.0
    %1744 = vmatprep.subr.mxu0 0.0
    %1745 = vmatpush1.msra.mxu0 0.0
    %1746 = vmatprep.subr.mxu0 0.0
    %1747 = vmatpush1.msra.mxu0 0.0
    %1748 = vmatprep.subr.mxu0 0.0
    %1749 = vmatpush1.msra.mxu0 0.0
    %1750 = vmatprep.subr.mxu0 0.0
    %1751 = vmatpush1.msra.mxu0 0.0
    %1752 = vmatprep.subr.mxu0 0.0
    %1753 = vmatpush1.msra.mxu0 0.0
    %1754 = vmatprep.subr.mxu0 0.0
    %1755 = vmatpush1.msra.mxu0 0.0
    %1756 = vmatprep.mubr.f32.mxu0 0.0
    %1757 = vmatmul.mubr.f32.gmra.mrb[0].mxu0 %v1619
    %v1758 = vpop.f32.mrb[0].mxu0
    %v1759 = vadd.f32 0.0, %v1758
    %v1760 = vpop.f32.mrb[0].mxu0
    %v1761 = vadd.f32 0.0, %v1760
    %1762 = vdwg.mxu0
    %1763 = vmatprep.subr.mxu0 %v853
    %1764 = vmatpush1.msra.mxu0 %v852
    %1765 = vmatprep.subr.mxu0 %v857
    %1766 = vmatpush1.msra.mxu0 %v856
    %1767 = vmatprep.subr.mxu0 %v861
    %1768 = vmatpush1.msra.mxu0 %v860
    %1769 = vmatprep.subr.mxu0 %v865
    %1770 = vmatpush1.msra.mxu0 %v864
    %1771 = vmatprep.subr.mxu0 %v869
    %1772 = vmatpush1.msra.mxu0 %v868
    %1773 = vmatprep.subr.mxu0 %v873
    %1774 = vmatpush1.msra.mxu0 %v872
    %1775 = vmatprep.subr.mxu0 %v877
    %1776 = vmatpush1.msra.mxu0 %v876
    %1777 = vmatprep.subr.mxu0 %v881
    %1778 = vmatpush1.msra.mxu0 %v880
    %1779 = vmatprep.subr.mxu0 %v885
    %1780 = vmatpush1.msra.mxu0 %v884
    %1781 = vmatprep.subr.mxu0 %v889
    %1782 = vmatpush1.msra.mxu0 %v888
    %1783 = vmatprep.subr.mxu0 %v893
    %1784 = vmatpush1.msra.mxu0 %v892
    %1785 = vmatprep.subr.mxu0 %v897
    %1786 = vmatpush1.msra.mxu0 %v896
    %1787 = vmatprep.subr.mxu0 %v901
    %1788 = vmatpush1.msra.mxu0 %v900
    %1789 = vmatprep.subr.mxu0 %v905
    %1790 = vmatpush1.msra.mxu0 %v904
    %1791 = vmatprep.subr.mxu0 %v909
    %1792 = vmatpush1.msra.mxu0 %v908
    %1793 = vmatprep.subr.mxu0 %v913
    %1794 = vmatpush1.msra.mxu0 %v912
    %1795 = vmatprep.subr.mxu0 0.0
    %1796 = vmatpush1.msra.mxu0 0.0
    %1797 = vmatprep.subr.mxu0 0.0
    %1798 = vmatpush1.msra.mxu0 0.0
    %1799 = vmatprep.subr.mxu0 0.0
    %1800 = vmatpush1.msra.mxu0 0.0
    %1801 = vmatprep.subr.mxu0 0.0
    %1802 = vmatpush1.msra.mxu0 0.0
    %1803 = vmatprep.subr.mxu0 0.0
    %1804 = vmatpush1.msra.mxu0 0.0
    %1805 = vmatprep.subr.mxu0 0.0
    %1806 = vmatpush1.msra.mxu0 0.0
    %1807 = vmatprep.subr.mxu0 0.0
    %1808 = vmatpush1.msra.mxu0 0.0
    %1809 = vmatprep.subr.mxu0 0.0
    %1810 = vmatpush1.msra.mxu0 0.0
    %1811 = vmatprep.subr.mxu0 0.0
    %1812 = vmatpush1.msra.mxu0 0.0
    %1813 = vmatprep.subr.mxu0 0.0
    %1814 = vmatpush1.msra.mxu0 0.0
    %1815 = vmatprep.subr.mxu0 0.0
    %1816 = vmatpush1.msra.mxu0 0.0
    %1817 = vmatprep.subr.mxu0 0.0
    %1818 = vmatpush1.msra.mxu0 0.0
    %1819 = vmatprep.subr.mxu0 0.0
    %1820 = vmatpush1.msra.mxu0 0.0
    %1821 = vmatprep.subr.mxu0 0.0
    %1822 = vmatpush1.msra.mxu0 0.0
    %1823 = vmatprep.subr.mxu0 0.0
    %1824 = vmatpush1.msra.mxu0 0.0
    %1825 = vmatprep.subr.mxu0 0.0
    %1826 = vmatpush1.msra.mxu0 0.0
    %1827 = vmatprep.mubr.f32.mxu0 0.0
    %1828 = vmatmul.mubr.f32.gmra.mrb[0].mxu0 %v1619
    %v1829 = vpop.f32.mrb[0].mxu0
    %v1830 = vadd.f32 0.0, %v1829
    %v1831 = vpop.f32.mrb[0].mxu0
    %v1832 = vadd.f32 0.0, %v1831
    %1833 = vdwg.mxu0
    %v1838 = vrot.slane %v1759, 5
    %v1839 = vrot.slane %v1761, 5
    %v1840 = vrot.slane %v1830, 5
    %v1841 = vrot.slane %v1832, 5
    %v1846 = vadd.f32 %v775, %v1838
    %v1847 = vadd.f32 %v777, %v1839
    %v1848 = vadd.f32 %v846, %v1840
    %v1849 = vadd.f32 %v848, %v1841
    %v1850 = vxor.u32 %v1846, 2147483648
    %v1851 = vxor.u32 %v1847, 2147483648
    %v1852 = vxor.u32 %v1848, 2147483648
    %v1853 = vmul.f32 %v1850, 1.442695
    %v1854 = vpow.pop %v1853
    %v1855 = vmul.f32 %v1851, 1.442695
    %v1856 = vpow.pop %v1855
    %v1857 = vmul.f32 %v1852, 1.442695
    %v1858 = vpow.pop %v1857
    %v1859 = vadd.f32 %v1854, 1.0
    %v1860 = vadd.f32 %v1856, 1.0
    %v1861 = vadd.f32 %v1858, 1.0
    %v1862 = vrcp.pop %v1859
    %v1863 = vmul.f32 1.0, %v1862
    %v1864 = vrcp.pop %v1860
    %v1865 = vmul.f32 1.0, %v1864
    %v1866 = vrcp.pop %v1861
    %v1867 = vmul.f32 1.0, %v1866
    %v1868 = vtanh.pop %v1849
    %v1870 = vrot.slane %v1615, 7
    %v1872 = vmul.f32 %v1865, %v1870
    %v1873 = vmul.f32 %v1863, %v1868
    %v1874 = vadd.f32 %v1872, %v1873
    %v1875 = vtanh.pop %v1874
    %v1876 = vmul.f32 %v1867, %v1875
    %v1878 = vrot.slane %v1876, 3
    %1880 = vmatprep.subr.mxu0 0.0
    %1881 = vmatpush1.msra.mxu0 %v914
    %1882 = vmatprep.subr.mxu0 0.0
    %1883 = vmatpush1.msra.mxu0 %v915
    %1884 = vmatprep.subr.mxu0 0.0
    %1885 = vmatpush1.msra.mxu0 %v916
    %1886 = vmatprep.subr.mxu0 0.0
    %1887 = vmatpush1.msra.mxu0 %v917
    %1888 = vmatprep.subr.mxu0 0.0
    %1889 = vmatpush1.msra.mxu0 %v918
    %1890 = vmatprep.subr.mxu0 0.0
    %1891 = vmatpush1.msra.mxu0 %v919
    %1892 = vmatprep.subr.mxu0 0.0
    %1893 = vmatpush1.msra.mxu0 %v920
    %1894 = vmatprep.subr.mxu0 0.0
    %1895 = vmatpush1.msra.mxu0 %v921
    %1896 = vmatprep.subr.mxu0 0.0
    %1897 = vmatpush1.msra.mxu0 %v922
    %1898 = vmatprep.subr.mxu0 0.0
    %1899 = vmatpush1.msra.mxu0 %v923
    %1900 = vmatprep.subr.mxu0 0.0
    %1901 = vmatpush1.msra.mxu0 %v924
    %1902 = vmatprep.subr.mxu0 0.0
    %1903 = vmatpush1.msra.mxu0 %v925
    %1904 = vmatprep.subr.mxu0 0.0
    %1905 = vmatpush1.msra.mxu0 %v926
    %1906 = vmatprep.subr.mxu0 0.0
    %1907 = vmatpush1.msra.mxu0 %v927
    %1908 = vmatprep.subr.mxu0 0.0
    %1909 = vmatpush1.msra.mxu0 %v928
    %1910 = vmatprep.subr.mxu0 0.0
    %1911 = vmatpush1.msra.mxu0 %v929
    %1912 = vmatprep.subr.mxu0 0.0
    %1913 = vmatpush1.msra.mxu0 0.0
    %1914 = vmatprep.subr.mxu0 0.0
    %1915 = vmatpush1.msra.mxu0 0.0
    %1916 = vmatprep.subr.mxu0 0.0
    %1917 = vmatpush1.msra.mxu0 0.0
    %1918 = vmatprep.subr.mxu0 0.0
    %1919 = vmatpush1.msra.mxu0 0.0
    %1920 = vmatprep.subr.mxu0 0.0
    %1921 = vmatpush1.msra.mxu0 0.0
    %1922 = vmatprep.subr.mxu0 0.0
    %1923 = vmatpush1.msra.mxu0 0.0
    %1924 = vmatprep.subr.mxu0 0.0
    %1925 = vmatpush1.msra.mxu0 0.0
    %1926 = vmatprep.subr.mxu0 0.0
    %1927 = vmatpush1.msra.mxu0 0.0
    %1928 = vmatprep.subr.mxu0 0.0
    %1929 = vmatpush1.msra.mxu0 0.0
    %1930 = vmatprep.subr.mxu0 0.0
    %1931 = vmatpush1.msra.mxu0 0.0
    %1932 = vmatprep.subr.mxu0 0.0
    %1933 = vmatpush1.msra.mxu0 0.0
    %1934 = vmatprep.subr.mxu0 0.0
    %1935 = vmatpush1.msra.mxu0 0.0
    %1936 = vmatprep.subr.mxu0 0.0
    %1937 = vmatpush1.msra.mxu0 0.0
    %1938 = vmatprep.subr.mxu0 0.0
    %1939 = vmatpush1.msra.mxu0 0.0
    %1940 = vmatprep.subr.mxu0 0.0
    %1941 = vmatpush1.msra.mxu0 0.0
    %1942 = vmatprep.subr.mxu0 0.0
    %1943 = vmatpush1.msra.mxu0 0.0
    %1944 = vmatprep.mubr.f32.mxu0 0.0
    %1945 = vmatmul.mubr.f32.gmra.mrb[0].mxu0 %v1878
    %v1946 = vpop.f32.mrb[0].mxu0
    %v1947 = vadd.f32 %v930, %v1946
    %v1948 = vpop.f32.mrb[0].mxu0
    %1949 = vdwg.mxu0
    %1950 = vst [vmem:[#allocation2 + $0x3] sm:$0x1] %v1947
    %1951 = vst [vmem:[#allocation4 - $0x3] sm:$0x8] %v1876
    %1952 = vst [vmem:[#allocation6 - $0x3] sm:$0x8] %v1874
    // Predicated region
    $region82: #{conv_qnet_forward.1} parent=1 // pred_check
      _
    $region83: #{conv_qnet_forward.1} parent=1 // pred_check_branch
      %1954 = sbr.rel (0) target = $region85
    $region84: #{conv_qnet_forward.1} parent=1 // pred_region
      %s1956 = ssub.s32 64, 64
      %1957 = vsyncadd [#allocation3], %s1956
      %s1959 = sshll.u32 [#allocation2], 4
      %s1960 = int_to_ptr.vmem [resolvable:$true] %s1959
      %1962 = dma.vmem_to_hbm [thread:$0]  %s1960, 64, %s20, [#allocation3]
    $region85: #{conv_qnet_forward.1} parent=1 // pred_fallthru
      _
    // Predicated region
    $region86: #{conv_qnet_forward.1} parent=1 // pred_check
      _
    $region87: #{conv_qnet_forward.1} parent=1 // pred_check_branch
      %1964 = sbr.rel (0) target = $region89
    $region88: #{conv_qnet_forward.1} parent=1 // pred_region
      %s1966 = ssub.s32 16, 16
      %1967 = vsyncadd [#allocation5], %s1966
      %s1969 = sshll.u32 [#allocation4], 4
      %s1970 = int_to_ptr.vmem [resolvable:$true] %s1969
      %1972 = dma.vmem_to_hbm [thread:$0]  %s1970, 16, %s21, [#allocation5]
    $region89: #{conv_qnet_forward.1} parent=1 // pred_fallthru
      _
    // Predicated region
    $region90: #{conv_qnet_forward.1} parent=1 // pred_check
      _
    $region91: #{conv_qnet_forward.1} parent=1 // pred_check_branch
      %1974 = sbr.rel (0) target = $region93
    $region92: #{conv_qnet_forward.1} parent=1 // pred_region
      %s1976 = ssub.s32 16, 16
      %1977 = vsyncadd [#allocation5], %s1976
      %s1979 = sshll.u32 [#allocation6], 4
      %s1980 = int_to_ptr.vmem [resolvable:$true] %s1979
      %1982 = dma.vmem_to_hbm [thread:$0]  %s1980, 16, %s22, [#allocation5]
    $region93: #{conv_qnet_forward.1} parent=1 // pred_fallthru
      _
    // Predicated region
    $region94: #{conv_qnet_forward.1} parent=1 // pred_check
      _
    $region95: #{conv_qnet_forward.1} parent=1 // pred_check_branch
      %1984 = sbr.rel (0) target = $region97
    $region96: #{conv_qnet_forward.1} parent=1 // pred_region
      %1985 = dma.done [#allocation3], 64
    $region97: #{conv_qnet_forward.1} parent=1 // pred_fallthru
      _
    // Predicated region
    $region98: #{conv_qnet_forward.1} parent=1 // pred_check
      _
    $region99: #{conv_qnet_forward.1} parent=1 // pred_check_branch
      %1987 = sbr.rel (0) target = $region101
    $region100: #{conv_qnet_forward.1} parent=1 // pred_region
      %1988 = dma.done [#allocation5], 16
    $region101: #{conv_qnet_forward.1} parent=1 // pred_fallthru
      _
    // Predicated region
    $region102: #{conv_qnet_forward.1} parent=1 // pred_check
      _
    $region103: #{conv_qnet_forward.1} parent=1 // pred_check_branch
      %1990 = sbr.rel (0) target = $region105
    $region104: #{conv_qnet_forward.1} parent=1 // pred_region
      %1991 = dma.done [#allocation5], 16
    $region105: #{conv_qnet_forward.1} parent=1 // pred_fallthru
      _
    %1992 = vsyncpa [#allocation3], 1
    %1993 = vsyncpa [#allocation5], 1

</llo_original>
